<compile_context>
chip_gen: v5e
topology: v5e:2x2
jax: 0.10.0
libtpu: 0.0.40
codegen_flags: <defaults>
</compile_context>

<pallas_src>
import functools

import jax
import jax.numpy as jnp
from jax.experimental import pallas as pl
from jax.experimental.pallas import tpu as pltpu

INPUT_SIZE = 256
HIDDEN_SIZE = 256


def lstm_seq_kernel(x_ref, h0_ref, c0_ref, w_ref, b_ref,
                    h_out_ref, c_out_ref, h_sc, c_sc):
    """One LSTM step per grid index t; h/c carried in f32 VMEM scratch."""
    t = pl.program_id(0)

    @pl.when(t == 0)
    def _():
        h_sc[...] = h0_ref[...].astype(jnp.float32)
        c_sc[...] = c0_ref[...].astype(jnp.float32)

    I = INPUT_SIZE
    H = HIDDEN_SIZE

    x_bf = x_ref[...].astype(w_ref.dtype)        # (B, I)  bf16 (no-op if already)
    h_bf = h_sc[...].astype(w_ref.dtype)         # (B, H)  bf16 MXU input only

    # Fused gates = x @ W_ih^T + h @ W_hh^T + (b_ih + b_hh) in an f32 accumulator.
    # Static, 256-aligned weight slices; summation stays in f32.
    gates = jnp.dot(x_bf, w_ref[:I, :], preferred_element_type=jnp.float32)
    gates = gates + jnp.dot(h_bf, w_ref[I:, :], preferred_element_type=jnp.float32)
    gates = gates + b_ref[...]                   # (1, 4H) broadcast

    # Gate order [i, f, g, o] matches torch.nn.LSTMCell.
    i_g = jax.nn.sigmoid(gates[:, 0 * H:1 * H])
    f_g = jax.nn.sigmoid(gates[:, 1 * H:2 * H])
    g_g = jnp.tanh(gates[:, 2 * H:3 * H])
    o_g = jax.nn.sigmoid(gates[:, 3 * H:4 * H])

    c_new = f_g * c_sc[...] + i_g * g_g
    h_new = o_g * jnp.tanh(c_new)

    h_sc[...] = h_new
    c_sc[...] = c_new
    h_out_ref[...] = h_new.astype(h_out_ref.dtype)
    c_out_ref[...] = c_new.astype(c_out_ref.dtype)


def prepare_lstm_params(w_ih, w_hh, b_ih, b_hh, weight_dtype=jnp.bfloat16):
    """One-time (init-time) weight prep.

    w_ih: (4H, 256), w_hh: (4H, 256), b_ih/b_hh: (4H,)  -- PyTorch param layout.
    Returns:
      w_fused: (input+hidden, 4H) = [W_ih^T ; W_hh^T] in `weight_dtype`
               (use jnp.float32 for strict torch parity).
      bias:    (1, 4H) f32 = b_ih + b_hh.
    """
    w_fused = jnp.concatenate(
        [jnp.transpose(w_ih), jnp.transpose(w_hh)], axis=0).astype(weight_dtype)
    bias = (b_ih + b_hh).reshape(1, -1).astype(jnp.float32)
    return w_fused, bias


@jax.jit
def lstm_sequence(xs, h0, c0, w_fused, bias):
    """Run T LSTM steps with VMEM-resident weights.

    xs: (T, B, 256)  (cast to weight dtype in here)
    h0, c0: (B, 256) f32 initial state
    w_fused: (512, 1024), bias: (1, 1024) f32
    Returns (h_seq, c_seq): both (T, B, 256) f32.
    """
    T, B, _ = xs.shape
    H = HIDDEN_SIZE
    K = INPUT_SIZE + HIDDEN_SIZE

    xs = xs.astype(w_fused.dtype)
    h0 = h0.astype(jnp.float32)
    c0 = c0.astype(jnp.float32)

    resident2d = lambda shape: pl.BlockSpec(shape, lambda t: (0, 0))

    h_seq, c_seq = pl.pallas_call(
        lstm_seq_kernel,
        out_shape=(
            jax.ShapeDtypeStruct((T, B, H), jnp.float32),
            jax.ShapeDtypeStruct((T, B, H), jnp.float32),
        ),
        grid_spec=pltpu.PrefetchScalarGridSpec(
            num_scalar_prefetch=0,
            grid=(T,),
            in_specs=[
                # Per-step input tile (leading T dim squeezed in-kernel).
                pl.BlockSpec((None, B, INPUT_SIZE), lambda t: (t, 0, 0)),
                # Initial state + weights + bias: constant block index ->
                # fetched once, VMEM-resident across the whole time loop.
                resident2d((B, H)),            # h0
                resident2d((B, H)),            # c0
                resident2d((K, 4 * H)),        # fused weight slab
                resident2d((1, 4 * H)),        # fused bias
            ],
            out_specs=[
                pl.BlockSpec((None, B, H), lambda t: (t, 0, 0)),
                pl.BlockSpec((None, B, H), lambda t: (t, 0, 0)),
            ],
            scratch_shapes=[
                pltpu.VMEM((B, H), jnp.float32),   # h carry
                pltpu.VMEM((B, H), jnp.float32),   # c carry
            ],
        ),
        compiler_params=pltpu.CompilerParams(
            dimension_semantics=("arbitrary",),    # serial recurrence over T
        ),
    )(xs, h0, c0, w_fused, bias)
    return h_seq, c_seq


@jax.jit
def lstm_cell(xt, h, c, w_fused, bias):
    """Single-step module forward (matches torch.nn.LSTMCell semantics).

    xt, h, c: (B, 256).  Returns (h_new, c_new) in f32.
    Implemented as the T == 1 instance of the sequence kernel.
    """
    h_seq, c_seq = lstm_sequence(xt[None], h, c, w_fused, bias)
    return h_seq[0], c_seq[0]


def _init_params(key):
    """Deterministic init matching PyTorch LSTMCell default: U(-k, k), k=1/sqrt(H)."""
    k = 1.0 / jnp.sqrt(jnp.float32(HIDDEN_SIZE))
    ks = jax.random.split(key, 4)
    w_ih = jax.random.uniform(ks[0], (4 * HIDDEN_SIZE, INPUT_SIZE),
                              jnp.float32, -k, k)
    w_hh = jax.random.uniform(ks[1], (4 * HIDDEN_SIZE, HIDDEN_SIZE),
                              jnp.float32, -k, k)
    b_ih = jax.random.uniform(ks[2], (4 * HIDDEN_SIZE,), jnp.float32, -k, k)
    b_hh = jax.random.uniform(ks[3], (4 * HIDDEN_SIZE,), jnp.float32, -k, k)
    return w_ih, w_hh, b_ih, b_hh


def _step_f32(xt, h, c, w_ih, w_hh, b_ih, b_hh):
    # Pure-JAX f32 reference of torch.nn.LSTMCell forward (gate order i, f, g, o).
    gates = xt @ w_ih.T + b_ih + h @ w_hh.T + b_hh
    H = HIDDEN_SIZE
    i = jax.nn.sigmoid(gates[:, 0 * H:1 * H])
    f = jax.nn.sigmoid(gates[:, 1 * H:2 * H])
    g = jnp.tanh(gates[:, 2 * H:3 * H])
    o = jax.nn.sigmoid(gates[:, 3 * H:4 * H])
    c_new = f * c + i * g
    h_new = o * jnp.tanh(c_new)
    return h_new, c_new


def _step_matched(xt, h, c, w_fused, bias):
    # Reference using the same bf16-rounded MXU operands as the kernel
    # (x and h rounded to weight dtype; accumulation and gate math in f32).
    I = INPUT_SIZE
    H = HIDDEN_SIZE
    x_r = xt.astype(w_fused.dtype).astype(jnp.float32)
    h_r = h.astype(w_fused.dtype).astype(jnp.float32)
    w = w_fused.astype(jnp.float32)
    gates = x_r @ w[:I, :] + h_r @ w[I:, :] + bias
    i = jax.nn.sigmoid(gates[:, 0 * H:1 * H])
    f = jax.nn.sigmoid(gates[:, 1 * H:2 * H])
    g = jnp.tanh(gates[:, 2 * H:3 * H])
    o = jax.nn.sigmoid(gates[:, 3 * H:4 * H])
    c_new = f * c + i * g
    h_new = o * jnp.tanh(c_new)
    return h_new, c_new


if __name__ == "__main__":
    key = jax.random.PRNGKey(0)
    kp, kx, kh, kc, ks = jax.random.split(key, 5)

    B = 8   # batch
    T = 4   # sequence length for the amortized sequence test
    w_ih, w_hh, b_ih, b_hh = _init_params(kp)
    xt = jax.random.normal(kx, (B, INPUT_SIZE), jnp.float32)
    h = jax.random.normal(kh, (B, HIDDEN_SIZE), jnp.float32)
    c = jax.random.normal(kc, (B, HIDDEN_SIZE), jnp.float32)
    xs = jax.random.normal(ks, (T, B, INPUT_SIZE), jnp.float32)

    # Weight prep happens once, outside the per-call path.
    w_fused, bias = prepare_lstm_params(w_ih, w_hh, b_ih, b_hh,
                                        weight_dtype=jnp.bfloat16)

    # ---- Single-step module forward (spec semantics) ----
    h_new, c_new = lstm_cell(xt, h, c, w_fused, bias)
    jax.block_until_ready((h_new, c_new))

    h_m, c_m = _step_matched(xt, h, c, w_fused, bias)
    assert jnp.allclose(h_new, h_m, atol=2e-3, rtol=2e-3), "matched h mismatch"
    assert jnp.allclose(c_new, c_m, atol=2e-3, rtol=2e-3), "matched c mismatch"

    h_f, c_f = _step_f32(xt, h, c, w_ih, w_hh, b_ih, b_hh)
    assert jnp.allclose(h_new, h_f, atol=3e-2), "f32-reference h mismatch"
    assert jnp.allclose(c_new, c_f, atol=3e-2), "f32-reference c mismatch"

    # ---- Sequence form (grid=(T,), VMEM-resident weights) ----
    h_seq, c_seq = lstm_sequence(xs, h, c, w_fused, bias)
    jax.block_until_ready((h_seq, c_seq))

    h_ref, c_ref = h, c
    for t in range(T):
        h_ref, c_ref = _step_matched(xs[t], h_ref, c_ref, w_fused, bias)
        assert jnp.allclose(h_seq[t], h_ref, atol=3e-3, rtol=3e-3), \
            f"seq h mismatch at t={t}"
        assert jnp.allclose(c_seq[t], c_ref, atol=3e-3, rtol=3e-3), \
            f"seq c mismatch at t={t}"

    print("KERNEL_OK")
</pallas_src>

<mosaic_0001>
module attributes {stable_mosaic.version = 11 : i64} {
  func.func @lstm_seq_kernel(%arg0: i32, %arg1: memref<1x8x256xbf16, #tpu.memory_space<vmem>>, %arg2: memref<8x256xf32, #tpu.memory_space<vmem>>, %arg3: memref<8x256xf32, #tpu.memory_space<vmem>>, %arg4: memref<512x1024xbf16, #tpu.memory_space<vmem>>, %arg5: memref<1x1024xf32, #tpu.memory_space<vmem>>, %arg6: memref<1x8x256xf32, #tpu.memory_space<vmem>>, %arg7: memref<1x8x256xf32, #tpu.memory_space<vmem>>, %arg8: memref<8x256xf32, #tpu.memory_space<vmem>>, %arg9: memref<8x256xf32, #tpu.memory_space<vmem>>) attributes {dimension_semantics = [#tpu.dimension_semantics<arbitrary>], iteration_bounds = array<i64: 1>, scalar_prefetch = 0 : i64, scratch_operands = 2 : i64, tpu.core_type = #tpu.core_type<tc>, window_params = [{transform_indices = @transform_0, window_bounds = array<i64: 1, 8, 256>}, {pipeline_mode = #tpu.pipeline_mode<synchronous>, transform_indices = @transform_1, window_bounds = array<i64: 8, 256>}, {pipeline_mode = #tpu.pipeline_mode<synchronous>, transform_indices = @transform_2, window_bounds = array<i64: 8, 256>}, {pipeline_mode = #tpu.pipeline_mode<synchronous>, transform_indices = @transform_3, window_bounds = array<i64: 512, 1024>}, {pipeline_mode = #tpu.pipeline_mode<synchronous>, transform_indices = @transform_4, window_bounds = array<i64: 1, 1024>}, {transform_indices = @transform_5, window_bounds = array<i64: 1, 8, 256>}, {transform_indices = @transform_6, window_bounds = array<i64: 1, 8, 256>}]} {
    %c0_i32 = arith.constant 0 : i32
    %0 = arith.cmpi eq, %arg0, %c0_i32 : i32
    %1 = arith.extui %0 : i1 to i32
    %c0_i32_0 = arith.constant 0 : i32
    %2 = arith.cmpi ne, %1, %c0_i32_0 : i32
    scf.if %2 {
      %c0_26 = arith.constant 0 : index
      %c0_27 = arith.constant 0 : index
      %49 = vector.load %arg2[%c0_26, %c0_27] : memref<8x256xf32, #tpu.memory_space<vmem>>, vector<8x256xf32>
      %c0_28 = arith.constant 0 : index
      %c0_29 = arith.constant 0 : index
      %50 = vector.load %arg8[%c0_28, %c0_29] : memref<8x256xf32, #tpu.memory_space<vmem>>, vector<8x256xf32>
      tpu.vector_store %arg8[%c0_28, %c0_29], %49 {strides = array<i32>} : memref<8x256xf32, #tpu.memory_space<vmem>>, vector<8x256xf32>,
      %c0_30 = arith.constant 0 : index
      %c0_31 = arith.constant 0 : index
      %51 = vector.load %arg3[%c0_30, %c0_31] : memref<8x256xf32, #tpu.memory_space<vmem>>, vector<8x256xf32>
      %c0_32 = arith.constant 0 : index
      %c0_33 = arith.constant 0 : index
      %52 = vector.load %arg9[%c0_32, %c0_33] : memref<8x256xf32, #tpu.memory_space<vmem>>, vector<8x256xf32>
      tpu.vector_store %arg9[%c0_32, %c0_33], %51 {strides = array<i32>} : memref<8x256xf32, #tpu.memory_space<vmem>>, vector<8x256xf32>,
    } else {
    }
    %c0 = arith.constant 0 : index
    %c0_1 = arith.constant 0 : index
    %c0_2 = arith.constant 0 : index
    %3 = vector.load %arg1[%c0, %c0_1, %c0_2] : memref<1x8x256xbf16, #tpu.memory_space<vmem>>, vector<1x8x256xbf16>
    %4 = vector.shape_cast %3 : vector<1x8x256xbf16> to vector<8x256xbf16>
    %c0_3 = arith.constant 0 : index
    %c0_4 = arith.constant 0 : index
    %5 = vector.load %arg8[%c0_3, %c0_4] : memref<8x256xf32, #tpu.memory_space<vmem>>, vector<8x256xf32>
    %6 = arith.truncf %5 : vector<8x256xf32> to vector<8x256xbf16>
    %c0_5 = arith.constant 0 : index
    %c0_6 = arith.constant 0 : index
    %7 = vector.load %arg4[%c0_5, %c0_6] : memref<512x1024xbf16, #tpu.memory_space<vmem>>, vector<256x1024xbf16>
    %cst = arith.constant dense<0.000000e+00> : vector<8x1024xf32>
    %8 = tpu.matmul %4, %7, %cst {dimension_numbers = #tpu.dot_dimension_numbers<[1], [0], [0], [1], [0, 0, 1, 1], [], []>} : vector<8x256xbf16>, vector<256x1024xbf16>, vector<8x1024xf32> -> vector<8x1024xf32>
    %c256 = arith.constant 256 : index
    %c0_7 = arith.constant 0 : index
    %9 = vector.load %arg4[%c256, %c0_7] : memref<512x1024xbf16, #tpu.memory_space<vmem>>, vector<256x1024xbf16>
    %cst_8 = arith.constant dense<0.000000e+00> : vector<8x1024xf32>
    %10 = tpu.matmul %6, %9, %cst_8 {dimension_numbers = #tpu.dot_dimension_numbers<[1], [0], [0], [1], [0, 0, 1, 1], [], []>} : vector<8x256xbf16>, vector<256x1024xbf16>, vector<8x1024xf32> -> vector<8x1024xf32>
    %11 = arith.addf %8, %10 : vector<8x1024xf32>
    %c0_9 = arith.constant 0 : index
    %c0_10 = arith.constant 0 : index
    %12 = vector.load %arg5[%c0_9, %c0_10] : memref<1x1024xf32, #tpu.memory_space<vmem>>, vector<1x1024xf32>
    %13 = vector.broadcast %12 : vector<1x1024xf32> to vector<8x1024xf32>
    %14 = arith.addf %11, %13 : vector<8x1024xf32>
    %15 = vector.extract_strided_slice %14 {offsets = [0, 0], sizes = [8, 256], strides = [1, 1]} : vector<8x1024xf32> to vector<8x256xf32>
    %16 = arith.negf %15 : vector<8x256xf32>
    %17 = math.exp %16 : vector<8x256xf32>
    %cst_11 = arith.constant 1.000000e+00 : f32
    %18 = vector.broadcast %cst_11 : f32 to vector<8x256xf32>
    %19 = arith.addf %18, %17 : vector<8x256xf32>
    %20 = arith.divf %18, %19 : vector<8x256xf32>
    %21 = vector.extract_strided_slice %14 {offsets = [0, 256], sizes = [8, 256], strides = [1, 1]} : vector<8x1024xf32> to vector<8x256xf32>
    %22 = arith.negf %21 : vector<8x256xf32>
    %23 = math.exp %22 : vector<8x256xf32>
    %cst_12 = arith.constant 1.000000e+00 : f32
    %24 = vector.broadcast %cst_12 : f32 to vector<8x256xf32>
    %25 = arith.addf %24, %23 : vector<8x256xf32>
    %26 = arith.divf %24, %25 : vector<8x256xf32>
    %27 = vector.extract_strided_slice %14 {offsets = [0, 512], sizes = [8, 256], strides = [1, 1]} : vector<8x1024xf32> to vector<8x256xf32>
    %28 = math.tanh %27 : vector<8x256xf32>
    %29 = vector.extract_strided_slice %14 {offsets = [0, 768], sizes = [8, 256], strides = [1, 1]} : vector<8x1024xf32> to vector<8x256xf32>
    %30 = arith.negf %29 : vector<8x256xf32>
    %31 = math.exp %30 : vector<8x256xf32>
    %cst_13 = arith.constant 1.000000e+00 : f32
    %32 = vector.broadcast %cst_13 : f32 to vector<8x256xf32>
    %33 = arith.addf %32, %31 : vector<8x256xf32>
    %34 = arith.divf %32, %33 : vector<8x256xf32>
    %c0_14 = arith.constant 0 : index
    %c0_15 = arith.constant 0 : index
    %35 = vector.load %arg9[%c0_14, %c0_15] : memref<8x256xf32, #tpu.memory_space<vmem>>, vector<8x256xf32>
    %36 = arith.mulf %26, %35 : vector<8x256xf32>
    %37 = arith.mulf %20, %28 : vector<8x256xf32>
    %38 = arith.addf %36, %37 : vector<8x256xf32>
    %39 = math.tanh %38 : vector<8x256xf32>
    %40 = arith.mulf %34, %39 : vector<8x256xf32>
    %c0_16 = arith.constant 0 : index
    %c0_17 = arith.constant 0 : index
    %41 = vector.load %arg8[%c0_16, %c0_17] : memref<8x256xf32, #tpu.memory_space<vmem>>, vector<8x256xf32>
    tpu.vector_store %arg8[%c0_16, %c0_17], %40 {strides = array<i32>} : memref<8x256xf32, #tpu.memory_space<vmem>>, vector<8x256xf32>,
    %c0_18 = arith.constant 0 : index
    %c0_19 = arith.constant 0 : index
    %42 = vector.load %arg9[%c0_18, %c0_19] : memref<8x256xf32, #tpu.memory_space<vmem>>, vector<8x256xf32>
    tpu.vector_store %arg9[%c0_18, %c0_19], %38 {strides = array<i32>} : memref<8x256xf32, #tpu.memory_space<vmem>>, vector<8x256xf32>,
    %c0_20 = arith.constant 0 : index
    %c0_21 = arith.constant 0 : index
    %c0_22 = arith.constant 0 : index
    %43 = vector.load %arg6[%c0_20, %c0_21, %c0_22] : memref<1x8x256xf32, #tpu.memory_space<vmem>>, vector<1x8x256xf32>
    %44 = vector.shape_cast %43 : vector<1x8x256xf32> to vector<8x256xf32>
    %45 = vector.shape_cast %40 : vector<8x256xf32> to vector<1x8x256xf32>
    tpu.vector_store %arg6[%c0_20, %c0_21, %c0_22], %45 {strides = array<i32>} : memref<1x8x256xf32, #tpu.memory_space<vmem>>, vector<1x8x256xf32>,
    %c0_23 = arith.constant 0 : index
    %c0_24 = arith.constant 0 : index
    %c0_25 = arith.constant 0 : index
    %46 = vector.load %arg7[%c0_23, %c0_24, %c0_25] : memref<1x8x256xf32, #tpu.memory_space<vmem>>, vector<1x8x256xf32>
    %47 = vector.shape_cast %46 : vector<1x8x256xf32> to vector<8x256xf32>
    %48 = vector.shape_cast %38 : vector<8x256xf32> to vector<1x8x256xf32>
    tpu.vector_store %arg7[%c0_23, %c0_24, %c0_25], %48 {strides = array<i32>} : memref<1x8x256xf32, #tpu.memory_space<vmem>>, vector<1x8x256xf32>,
    return
  }
  func.func @transform_0(%arg0: i32) -> (i32, i32, i32) {
    %c0_i32 = arith.constant 0 : i32
    %c0_i32_0 = arith.constant 0 : i32
    %c0_i32_1 = arith.constant 0 : i32
    return %arg0, %c0_i32, %c0_i32_0 : i32, i32, i32
  }
  func.func @transform_1(%arg0: i32) -> (i32, i32) {
    %c0_i32 = arith.constant 0 : i32
    %c0_i32_0 = arith.constant 0 : i32
    %c0_i32_1 = arith.constant 0 : i32
    return %c0_i32, %c0_i32_0 : i32, i32
  }
  func.func @transform_2(%arg0: i32) -> (i32, i32) {
    %c0_i32 = arith.constant 0 : i32
    %c0_i32_0 = arith.constant 0 : i32
    %c0_i32_1 = arith.constant 0 : i32
    return %c0_i32, %c0_i32_0 : i32, i32
  }
  func.func @transform_3(%arg0: i32) -> (i32, i32) {
    %c0_i32 = arith.constant 0 : i32
    %c0_i32_0 = arith.constant 0 : i32
    %c0_i32_1 = arith.constant 0 : i32
    return %c0_i32, %c0_i32_0 : i32, i32
  }
  func.func @transform_4(%arg0: i32) -> (i32, i32) {
    %c0_i32 = arith.constant 0 : i32
    %c0_i32_0 = arith.constant 0 : i32
    %c0_i32_1 = arith.constant 0 : i32
    return %c0_i32, %c0_i32_0 : i32, i32
  }
  func.func @transform_5(%arg0: i32) -> (i32, i32, i32) {
    %c0_i32 = arith.constant 0 : i32
    %c0_i32_0 = arith.constant 0 : i32
    %c0_i32_1 = arith.constant 0 : i32
    return %arg0, %c0_i32, %c0_i32_0 : i32, i32, i32
  }
  func.func @transform_6(%arg0: i32) -> (i32, i32, i32) {
    %c0_i32 = arith.constant 0 : i32
    %c0_i32_0 = arith.constant 0 : i32
    %c0_i32_1 = arith.constant 0 : i32
    return %arg0, %c0_i32, %c0_i32_0 : i32, i32, i32
  }
}

</mosaic_0001>

<llo_original>
// kernel: lstm_sequence.1
$region0: #{lstm_sequence.1}
  #allocation0 [shape = 'u32[]', space=smem, size = 0x4, offset = 0x4, fixed_abs, tag = 'smem constant byte address 0x4 - core index']
  #allocation1 [shape = 'u32[72,128]{1,0:T(1,128)}', space=vmem, size = 0x9000, scoped, tag = 'internal scratch']
  #allocation2 [shape = 'f32[8,256]{1,0:T(8,128)}', space=vmem, size = 0x2000, scoped, tag = 'scratch operand']
  #allocation3 [shape = 'f32[8,256]{1,0:T(8,128)}', space=vmem, size = 0x2000, scoped, tag = 'scratch operand']
  %s0 = inlined_call_operand.vmem [shape: bf16[1,8,256], index: 0, kind: input, shape index: {}]
  %s1 = inlined_call_operand.vmem [shape: f32[8,256], index: 1, kind: input, shape index: {}]
  %s2 = inlined_call_operand.hbm [shape: f32[8,256], index: 2, kind: input, shape index: {}]
  %s3 = inlined_call_operand.hbm [shape: bf16[512,1024], index: 3, kind: input, shape index: {}]
  %s4 = inlined_call_operand.vmem [shape: f32[1,1024], index: 4, kind: input, shape index: {}]
  %s5 = inlined_call_operand.hbm [shape: f32[1,8,256], index: 5, kind: output, shape index: {0}]
  %s6 = inlined_call_operand.hbm [shape: f32[1,8,256], index: 6, kind: output, shape index: {1}]
  %7 = xla_tuple %s5, %s6
  %s8 = sld [smem:[#allocation0]]
  $region50: #{lstm_sequence.1} parent=0
    _
  %s10 = ssub.s32 1, %s8
  %s11 = scalar_select 0, %s10, %s8
  $region1: #{lstm_sequence.1} parent=0
    #allocation4 [shape = 'u8[8192]{0}', space=vmem, size = 0x2000, scoped, tag = 'input window, operand 2, single buffered']
    #allocation5 [shape = 's32[1]{0}', space=sflag, size = 0x4, scoped, tag = 'scoped memory for lstm_sequence.1']
    #allocation6 [shape = 's32[1]{0}', space=sflag, size = 0x4, scoped, tag = 'scoped memory for lstm_sequence.1']
    #allocation7 [shape = 'u8[1048576]{0}', space=vmem, size = 0x100000, scoped, tag = 'input window, operand 3, single buffered']
    #allocation8 [shape = 's32[1]{0}', space=sflag, size = 0x4, scoped, tag = 'scoped memory for lstm_sequence.1']
    #allocation9 [shape = 'u8[8192]{0}', space=vmem, size = 0x2000, scoped, tag = 'output window, operand 0, single buffered']
    #allocation10 [shape = 'u8[8192]{0}', space=vmem, size = 0x2000, scoped, tag = 'output window, operand 1, single buffered']
    #allocation11 [shape = 's32[1]{0}', space=sflag, size = 0x4, scoped, tag = 'scoped memory for lstm_sequence.1']
    %12 = vsyncpa [#allocation5], 0
    %13 = vsyncpa [#allocation8], 0
    %14 = vsyncpa [#allocation6], 0
    %15 = vsyncpa [#allocation11], 0
    // Predicated region
    $region2: #{lstm_sequence.1} parent=1 // pred_check
      _
    $region3: #{lstm_sequence.1} parent=1 // pred_check_branch
      %17 = sbr.rel (0) target = $region5
    $region4: #{lstm_sequence.1} parent=1 // pred_region
      _
    $region5: #{lstm_sequence.1} parent=1 // pred_fallthru
      _
    // Predicated region
    $region6: #{lstm_sequence.1} parent=1 // pred_check
      _
    $region7: #{lstm_sequence.1} parent=1 // pred_check_branch
      %19 = sbr.rel (0) target = $region9
    $region8: #{lstm_sequence.1} parent=1 // pred_region
      _
    $region9: #{lstm_sequence.1} parent=1 // pred_fallthru
      _
    // Predicated region
    $region10: #{lstm_sequence.1} parent=1 // pred_check
      _
    $region11: #{lstm_sequence.1} parent=1 // pred_check_branch
      %21 = sbr.rel (0) target = $region13
    $region12: #{lstm_sequence.1} parent=1 // pred_region
      %23 = vsyncadd [#allocation5], 0
      %s25 = sshll.u32 %s2, 4
      %s26 = int_to_ptr.hbm [resolvable:$true] %s25
      %s27 = sshll.u32 [#allocation4], 4
      %s28 = int_to_ptr.vmem [resolvable:$true] %s27
      %30 = dma.hbm_to_vmem [thread:$0]  %s26, 256, %s28, [#allocation5]
    $region13: #{lstm_sequence.1} parent=1 // pred_fallthru
      _
    // Predicated region
    $region14: #{lstm_sequence.1} parent=1 // pred_check
      _
    $region15: #{lstm_sequence.1} parent=1 // pred_check_branch
      %32 = sbr.rel (0) target = $region17
    $region16: #{lstm_sequence.1} parent=1 // pred_region
      %34 = vsyncadd [#allocation8], 0
      %s35 = sshll.u32 %s3, 4
      %s36 = int_to_ptr.hbm [resolvable:$true] %s35
      %s37 = sshll.u32 [#allocation7], 4
      %s38 = int_to_ptr.vmem [resolvable:$true] %s37
      %43 = dma.hbm_to_vmem [thread:$0]  %s36, 32768, %s38, [#allocation8], 512, 512, 32
    $region17: #{lstm_sequence.1} parent=1 // pred_fallthru
      _
    // Predicated region
    $region18: #{lstm_sequence.1} parent=1 // pred_check
      _
    $region19: #{lstm_sequence.1} parent=1 // pred_check_branch
      %45 = sbr.rel (0) target = $region21
    $region20: #{lstm_sequence.1} parent=1 // pred_region
      _
    $region21: #{lstm_sequence.1} parent=1 // pred_fallthru
      _
    // Predicated region
    $region22: #{lstm_sequence.1} parent=1 // pred_check
      _
    $region23: #{lstm_sequence.1} parent=1 // pred_check_branch
      %47 = sbr.rel (0) target = $region25
    $region24: #{lstm_sequence.1} parent=1 // pred_region
      %49 = dma.done [#allocation5], 256
    $region25: #{lstm_sequence.1} parent=1 // pred_fallthru
      _
    // Predicated region
    $region26: #{lstm_sequence.1} parent=1 // pred_check
      _
    $region27: #{lstm_sequence.1} parent=1 // pred_check_branch
      %51 = sbr.rel (0) target = $region29
    $region28: #{lstm_sequence.1} parent=1 // pred_region
      %53 = dma.done [#allocation8], 32768
    $region29: #{lstm_sequence.1} parent=1 // pred_fallthru
      _
    %p54 = scmp.eq.s32.totalorder 0, 0
    // Predicated region
    $region30: #{lstm_sequence.1} parent=1 // pred_check
      %p55 = pneg %p54
    $region31: #{lstm_sequence.1} parent=1 // pred_check_branch
      %57 = sbr.rel (%p55) target = $region33
    $region32: #{lstm_sequence.1} parent=1 // pred_region
      %v58 = vld [vmem:[%s1] sm:$0xff]
      %v59 = vld [vmem:[%s1 + $0x8] sm:$0xff]
      %60 = vst [vmem:[#allocation2] sm:$0xff] %v58
      %61 = vst [vmem:[#allocation2 + $0x8] sm:$0xff] %v59
      %v62 = vld [vmem:[#allocation4] sm:$0xff]
      %v63 = vld [vmem:[#allocation4 + $0x8] sm:$0xff]
      %64 = vst [vmem:[#allocation3] sm:$0xff] %v62
      %65 = vst [vmem:[#allocation3 + $0x8] sm:$0xff] %v63
    $region33: #{lstm_sequence.1} parent=1 // pred_fallthru
      _
    %v66 = vld [vmem:[%s0] sm:$0xff]
    %v67 = vld [vmem:[#allocation2] sm:$0xff]
    %v68 = vld [vmem:[#allocation2 + $0x8] sm:$0xff]
    %v69 = vpack.c.bf16 %v67, %v67
    %v70 = vpack.c.bf16 %v68, %v68
    %v71 = vld [vmem:[#allocation7] sm:$0xff]
    %v72 = vld [vmem:[#allocation7 + $0x8] sm:$0xff]
    %v73 = vld [vmem:[#allocation7 + $0x10] sm:$0xff]
    %v74 = vld [vmem:[#allocation7 + $0x18] sm:$0xff]
    %v75 = vld [vmem:[#allocation7 + $0x20] sm:$0xff]
    %v76 = vld [vmem:[#allocation7 + $0x28] sm:$0xff]
    %v77 = vld [vmem:[#allocation7 + $0x30] sm:$0xff]
    %v78 = vld [vmem:[#allocation7 + $0x38] sm:$0xff]
    %v79 = vld [vmem:[#allocation7 + $0x40] sm:$0xff]
    %v80 = vld [vmem:[#allocation7 + $0x48] sm:$0xff]
    %v81 = vld [vmem:[#allocation7 + $0x50] sm:$0xff]
    %v82 = vld [vmem:[#allocation7 + $0x58] sm:$0xff]
    %v83 = vld [vmem:[#allocation7 + $0x60] sm:$0xff]
    %v84 = vld [vmem:[#allocation7 + $0x68] sm:$0xff]
    %v85 = vld [vmem:[#allocation7 + $0x70] sm:$0xff]
    %v86 = vld [vmem:[#allocation7 + $0x78] sm:$0xff]
    %v87 = vld [vmem:[#allocation7 + $0x80] sm:$0xff]
    %v88 = vld [vmem:[#allocation7 + $0x88] sm:$0xff]
    %v89 = vld [vmem:[#allocation7 + $0x90] sm:$0xff]
    %v90 = vld [vmem:[#allocation7 + $0x98] sm:$0xff]
    %v91 = vld [vmem:[#allocation7 + $0xa0] sm:$0xff]
    %v92 = vld [vmem:[#allocation7 + $0xa8] sm:$0xff]
    %v93 = vld [vmem:[#allocation7 + $0xb0] sm:$0xff]
    %v94 = vld [vmem:[#allocation7 + $0xb8] sm:$0xff]
    %v95 = vld [vmem:[#allocation7 + $0xc0] sm:$0xff]
    %v96 = vld [vmem:[#allocation7 + $0xc8] sm:$0xff]
    %v97 = vld [vmem:[#allocation7 + $0xd0] sm:$0xff]
    %v98 = vld [vmem:[#allocation7 + $0xd8] sm:$0xff]
    %v99 = vld [vmem:[#allocation7 + $0xe0] sm:$0xff]
    %v100 = vld [vmem:[#allocation7 + $0xe8] sm:$0xff]
    %v101 = vld [vmem:[#allocation7 + $0xf0] sm:$0xff]
    %v102 = vld [vmem:[#allocation7 + $0xf8] sm:$0xff]
    %v103 = vld [vmem:[#allocation7 + $0x100] sm:$0xff]
    %v104 = vld [vmem:[#allocation7 + $0x108] sm:$0xff]
    %v105 = vld [vmem:[#allocation7 + $0x110] sm:$0xff]
    %v106 = vld [vmem:[#allocation7 + $0x118] sm:$0xff]
    %v107 = vld [vmem:[#allocation7 + $0x120] sm:$0xff]
    %v108 = vld [vmem:[#allocation7 + $0x128] sm:$0xff]
    %v109 = vld [vmem:[#allocation7 + $0x130] sm:$0xff]
    %v110 = vld [vmem:[#allocation7 + $0x138] sm:$0xff]
    %v111 = vld [vmem:[#allocation7 + $0x140] sm:$0xff]
    %v112 = vld [vmem:[#allocation7 + $0x148] sm:$0xff]
    %v113 = vld [vmem:[#allocation7 + $0x150] sm:$0xff]
    %v114 = vld [vmem:[#allocation7 + $0x158] sm:$0xff]
    %v115 = vld [vmem:[#allocation7 + $0x160] sm:$0xff]
    %v116 = vld [vmem:[#allocation7 + $0x168] sm:$0xff]
    %v117 = vld [vmem:[#allocation7 + $0x170] sm:$0xff]
    %v118 = vld [vmem:[#allocation7 + $0x178] sm:$0xff]
    %v119 = vld [vmem:[#allocation7 + $0x180] sm:$0xff]
    %v120 = vld [vmem:[#allocation7 + $0x188] sm:$0xff]
    %v121 = vld [vmem:[#allocation7 + $0x190] sm:$0xff]
    %v122 = vld [vmem:[#allocation7 + $0x198] sm:$0xff]
    %v123 = vld [vmem:[#allocation7 + $0x1a0] sm:$0xff]
    %v124 = vld [vmem:[#allocation7 + $0x1a8] sm:$0xff]
    %v125 = vld [vmem:[#allocation7 + $0x1b0] sm:$0xff]
    %v126 = vld [vmem:[#allocation7 + $0x1b8] sm:$0xff]
    %v127 = vld [vmem:[#allocation7 + $0x1c0] sm:$0xff]
    %v128 = vld [vmem:[#allocation7 + $0x1c8] sm:$0xff]
    %v129 = vld [vmem:[#allocation7 + $0x1d0] sm:$0xff]
    %v130 = vld [vmem:[#allocation7 + $0x1d8] sm:$0xff]
    %v131 = vld [vmem:[#allocation7 + $0x1e0] sm:$0xff]
    %v132 = vld [vmem:[#allocation7 + $0x1e8] sm:$0xff]
    %v133 = vld [vmem:[#allocation7 + $0x1f0] sm:$0xff]
    %v134 = vld [vmem:[#allocation7 + $0x1f8] sm:$0xff]
    %v135 = vld [vmem:[#allocation7 + $0x200] sm:$0xff]
    %v136 = vld [vmem:[#allocation7 + $0x208] sm:$0xff]
    %v137 = vld [vmem:[#allocation7 + $0x210] sm:$0xff]
    %v138 = vld [vmem:[#allocation7 + $0x218] sm:$0xff]
    %v139 = vld [vmem:[#allocation7 + $0x220] sm:$0xff]
    %v140 = vld [vmem:[#allocation7 + $0x228] sm:$0xff]
    %v141 = vld [vmem:[#allocation7 + $0x230] sm:$0xff]
    %v142 = vld [vmem:[#allocation7 + $0x238] sm:$0xff]
    %v143 = vld [vmem:[#allocation7 + $0x240] sm:$0xff]
    %v144 = vld [vmem:[#allocation7 + $0x248] sm:$0xff]
    %v145 = vld [vmem:[#allocation7 + $0x250] sm:$0xff]
    %v146 = vld [vmem:[#allocation7 + $0x258] sm:$0xff]
    %v147 = vld [vmem:[#allocation7 + $0x260] sm:$0xff]
    %v148 = vld [vmem:[#allocation7 + $0x268] sm:$0xff]
    %v149 = vld [vmem:[#allocation7 + $0x270] sm:$0xff]
    %v150 = vld [vmem:[#allocation7 + $0x278] sm:$0xff]
    %v151 = vld [vmem:[#allocation7 + $0x280] sm:$0xff]
    %v152 = vld [vmem:[#allocation7 + $0x288] sm:$0xff]
    %v153 = vld [vmem:[#allocation7 + $0x290] sm:$0xff]
    %v154 = vld [vmem:[#allocation7 + $0x298] sm:$0xff]
    %v155 = vld [vmem:[#allocation7 + $0x2a0] sm:$0xff]
    %v156 = vld [vmem:[#allocation7 + $0x2a8] sm:$0xff]
    %v157 = vld [vmem:[#allocation7 + $0x2b0] sm:$0xff]
    %v158 = vld [vmem:[#allocation7 + $0x2b8] sm:$0xff]
    %v159 = vld [vmem:[#allocation7 + $0x2c0] sm:$0xff]
    %v160 = vld [vmem:[#allocation7 + $0x2c8] sm:$0xff]
    %v161 = vld [vmem:[#allocation7 + $0x2d0] sm:$0xff]
    %v162 = vld [vmem:[#allocation7 + $0x2d8] sm:$0xff]
    %v163 = vld [vmem:[#allocation7 + $0x2e0] sm:$0xff]
    %v164 = vld [vmem:[#allocation7 + $0x2e8] sm:$0xff]
    %v165 = vld [vmem:[#allocation7 + $0x2f0] sm:$0xff]
    %v166 = vld [vmem:[#allocation7 + $0x2f8] sm:$0xff]
    %v167 = vld [vmem:[#allocation7 + $0x300] sm:$0xff]
    %v168 = vld [vmem:[#allocation7 + $0x308] sm:$0xff]
    %v169 = vld [vmem:[#allocation7 + $0x310] sm:$0xff]
    %v170 = vld [vmem:[#allocation7 + $0x318] sm:$0xff]
    %v171 = vld [vmem:[#allocation7 + $0x320] sm:$0xff]
    %v172 = vld [vmem:[#allocation7 + $0x328] sm:$0xff]
    %v173 = vld [vmem:[#allocation7 + $0x330] sm:$0xff]
    %v174 = vld [vmem:[#allocation7 + $0x338] sm:$0xff]
    %v175 = vld [vmem:[#allocation7 + $0x340] sm:$0xff]
    %v176 = vld [vmem:[#allocation7 + $0x348] sm:$0xff]
    %v177 = vld [vmem:[#allocation7 + $0x350] sm:$0xff]
    %v178 = vld [vmem:[#allocation7 + $0x358] sm:$0xff]
    %v179 = vld [vmem:[#allocation7 + $0x360] sm:$0xff]
    %v180 = vld [vmem:[#allocation7 + $0x368] sm:$0xff]
    %v181 = vld [vmem:[#allocation7 + $0x370] sm:$0xff]
    %v182 = vld [vmem:[#allocation7 + $0x378] sm:$0xff]
    %v183 = vld [vmem:[#allocation7 + $0x380] sm:$0xff]
    %v184 = vld [vmem:[#allocation7 + $0x388] sm:$0xff]
    %v185 = vld [vmem:[#allocation7 + $0x390] sm:$0xff]
    %v186 = vld [vmem:[#allocation7 + $0x398] sm:$0xff]
    %v187 = vld [vmem:[#allocation7 + $0x3a0] sm:$0xff]
    %v188 = vld [vmem:[#allocation7 + $0x3a8] sm:$0xff]
    %v189 = vld [vmem:[#allocation7 + $0x3b0] sm:$0xff]
    %v190 = vld [vmem:[#allocation7 + $0x3b8] sm:$0xff]
    %v191 = vld [vmem:[#allocation7 + $0x3c0] sm:$0xff]
    %v192 = vld [vmem:[#allocation7 + $0x3c8] sm:$0xff]
    %v193 = vld [vmem:[#allocation7 + $0x3d0] sm:$0xff]
    %v194 = vld [vmem:[#allocation7 + $0x3d8] sm:$0xff]
    %v195 = vld [vmem:[#allocation7 + $0x3e0] sm:$0xff]
    %v196 = vld [vmem:[#allocation7 + $0x3e8] sm:$0xff]
    %v197 = vld [vmem:[#allocation7 + $0x3f0] sm:$0xff]
    %v198 = vld [vmem:[#allocation7 + $0x3f8] sm:$0xff]
    %v199 = vld [vmem:[#allocation7 + $0x400] sm:$0xff]
    %v200 = vld [vmem:[#allocation7 + $0x408] sm:$0xff]
    %v201 = vld [vmem:[#allocation7 + $0x410] sm:$0xff]
    %v202 = vld [vmem:[#allocation7 + $0x418] sm:$0xff]
    %v203 = vld [vmem:[#allocation7 + $0x420] sm:$0xff]
    %v204 = vld [vmem:[#allocation7 + $0x428] sm:$0xff]
    %v205 = vld [vmem:[#allocation7 + $0x430] sm:$0xff]
    %v206 = vld [vmem:[#allocation7 + $0x438] sm:$0xff]
    %v207 = vld [vmem:[#allocation7 + $0x440] sm:$0xff]
    %v208 = vld [vmem:[#allocation7 + $0x448] sm:$0xff]
    %v209 = vld [vmem:[#allocation7 + $0x450] sm:$0xff]
    %v210 = vld [vmem:[#allocation7 + $0x458] sm:$0xff]
    %v211 = vld [vmem:[#allocation7 + $0x460] sm:$0xff]
    %v212 = vld [vmem:[#allocation7 + $0x468] sm:$0xff]
    %v213 = vld [vmem:[#allocation7 + $0x470] sm:$0xff]
    %v214 = vld [vmem:[#allocation7 + $0x478] sm:$0xff]
    %v215 = vld [vmem:[#allocation7 + $0x480] sm:$0xff]
    %v216 = vld [vmem:[#allocation7 + $0x488] sm:$0xff]
    %v217 = vld [vmem:[#allocation7 + $0x490] sm:$0xff]
    %v218 = vld [vmem:[#allocation7 + $0x498] sm:$0xff]
    %v219 = vld [vmem:[#allocation7 + $0x4a0] sm:$0xff]
    %v220 = vld [vmem:[#allocation7 + $0x4a8] sm:$0xff]
    %v221 = vld [vmem:[#allocation7 + $0x4b0] sm:$0xff]
    %v222 = vld [vmem:[#allocation7 + $0x4b8] sm:$0xff]
    %v223 = vld [vmem:[#allocation7 + $0x4c0] sm:$0xff]
    %v224 = vld [vmem:[#allocation7 + $0x4c8] sm:$0xff]
    %v225 = vld [vmem:[#allocation7 + $0x4d0] sm:$0xff]
    %v226 = vld [vmem:[#allocation7 + $0x4d8] sm:$0xff]
    %v227 = vld [vmem:[#allocation7 + $0x4e0] sm:$0xff]
    %v228 = vld [vmem:[#allocation7 + $0x4e8] sm:$0xff]
    %v229 = vld [vmem:[#allocation7 + $0x4f0] sm:$0xff]
    %v230 = vld [vmem:[#allocation7 + $0x4f8] sm:$0xff]
    %v231 = vld [vmem:[#allocation7 + $0x500] sm:$0xff]
    %v232 = vld [vmem:[#allocation7 + $0x508] sm:$0xff]
    %v233 = vld [vmem:[#allocation7 + $0x510] sm:$0xff]
    %v234 = vld [vmem:[#allocation7 + $0x518] sm:$0xff]
    %v235 = vld [vmem:[#allocation7 + $0x520] sm:$0xff]
    %v236 = vld [vmem:[#allocation7 + $0x528] sm:$0xff]
    %v237 = vld [vmem:[#allocation7 + $0x530] sm:$0xff]
    %v238 = vld [vmem:[#allocation7 + $0x538] sm:$0xff]
    %v239 = vld [vmem:[#allocation7 + $0x540] sm:$0xff]
    %v240 = vld [vmem:[#allocation7 + $0x548] sm:$0xff]
    %v241 = vld [vmem:[#allocation7 + $0x550] sm:$0xff]
    %v242 = vld [vmem:[#allocation7 + $0x558] sm:$0xff]
    %v243 = vld [vmem:[#allocation7 + $0x560] sm:$0xff]
    %v244 = vld [vmem:[#allocation7 + $0x568] sm:$0xff]
    %v245 = vld [vmem:[#allocation7 + $0x570] sm:$0xff]
    %v246 = vld [vmem:[#allocation7 + $0x578] sm:$0xff]
    %v247 = vld [vmem:[#allocation7 + $0x580] sm:$0xff]
    %v248 = vld [vmem:[#allocation7 + $0x588] sm:$0xff]
    %v249 = vld [vmem:[#allocation7 + $0x590] sm:$0xff]
    %v250 = vld [vmem:[#allocation7 + $0x598] sm:$0xff]
    %v251 = vld [vmem:[#allocation7 + $0x5a0] sm:$0xff]
    %v252 = vld [vmem:[#allocation7 + $0x5a8] sm:$0xff]
    %v253 = vld [vmem:[#allocation7 + $0x5b0] sm:$0xff]
    %v254 = vld [vmem:[#allocation7 + $0x5b8] sm:$0xff]
    %v255 = vld [vmem:[#allocation7 + $0x5c0] sm:$0xff]
    %v256 = vld [vmem:[#allocation7 + $0x5c8] sm:$0xff]
    %v257 = vld [vmem:[#allocation7 + $0x5d0] sm:$0xff]
    %v258 = vld [vmem:[#allocation7 + $0x5d8] sm:$0xff]
    %v259 = vld [vmem:[#allocation7 + $0x5e0] sm:$0xff]
    %v260 = vld [vmem:[#allocation7 + $0x5e8] sm:$0xff]
    %v261 = vld [vmem:[#allocation7 + $0x5f0] sm:$0xff]
    %v262 = vld [vmem:[#allocation7 + $0x5f8] sm:$0xff]
    %v263 = vld [vmem:[#allocation7 + $0x600] sm:$0xff]
    %v264 = vld [vmem:[#allocation7 + $0x608] sm:$0xff]
    %v265 = vld [vmem:[#allocation7 + $0x610] sm:$0xff]
    %v266 = vld [vmem:[#allocation7 + $0x618] sm:$0xff]
    %v267 = vld [vmem:[#allocation7 + $0x620] sm:$0xff]
    %v268 = vld [vmem:[#allocation7 + $0x628] sm:$0xff]
    %v269 = vld [vmem:[#allocation7 + $0x630] sm:$0xff]
    %v270 = vld [vmem:[#allocation7 + $0x638] sm:$0xff]
    %v271 = vld [vmem:[#allocation7 + $0x640] sm:$0xff]
    %v272 = vld [vmem:[#allocation7 + $0x648] sm:$0xff]
    %v273 = vld [vmem:[#allocation7 + $0x650] sm:$0xff]
    %v274 = vld [vmem:[#allocation7 + $0x658] sm:$0xff]
    %v275 = vld [vmem:[#allocation7 + $0x660] sm:$0xff]
    %v276 = vld [vmem:[#allocation7 + $0x668] sm:$0xff]
    %v277 = vld [vmem:[#allocation7 + $0x670] sm:$0xff]
    %v278 = vld [vmem:[#allocation7 + $0x678] sm:$0xff]
    %v279 = vld [vmem:[#allocation7 + $0x680] sm:$0xff]
    %v280 = vld [vmem:[#allocation7 + $0x688] sm:$0xff]
    %v281 = vld [vmem:[#allocation7 + $0x690] sm:$0xff]
    %v282 = vld [vmem:[#allocation7 + $0x698] sm:$0xff]
    %v283 = vld [vmem:[#allocation7 + $0x6a0] sm:$0xff]
    %v284 = vld [vmem:[#allocation7 + $0x6a8] sm:$0xff]
    %v285 = vld [vmem:[#allocation7 + $0x6b0] sm:$0xff]
    %v286 = vld [vmem:[#allocation7 + $0x6b8] sm:$0xff]
    %v287 = vld [vmem:[#allocation7 + $0x6c0] sm:$0xff]
    %v288 = vld [vmem:[#allocation7 + $0x6c8] sm:$0xff]
    %v289 = vld [vmem:[#allocation7 + $0x6d0] sm:$0xff]
    %v290 = vld [vmem:[#allocation7 + $0x6d8] sm:$0xff]
    %v291 = vld [vmem:[#allocation7 + $0x6e0] sm:$0xff]
    %v292 = vld [vmem:[#allocation7 + $0x6e8] sm:$0xff]
    %v293 = vld [vmem:[#allocation7 + $0x6f0] sm:$0xff]
    %v294 = vld [vmem:[#allocation7 + $0x6f8] sm:$0xff]
    %v295 = vld [vmem:[#allocation7 + $0x700] sm:$0xff]
    %v296 = vld [vmem:[#allocation7 + $0x708] sm:$0xff]
    %v297 = vld [vmem:[#allocation7 + $0x710] sm:$0xff]
    %v298 = vld [vmem:[#allocation7 + $0x718] sm:$0xff]
    %v299 = vld [vmem:[#allocation7 + $0x720] sm:$0xff]
    %v300 = vld [vmem:[#allocation7 + $0x728] sm:$0xff]
    %v301 = vld [vmem:[#allocation7 + $0x730] sm:$0xff]
    %v302 = vld [vmem:[#allocation7 + $0x738] sm:$0xff]
    %v303 = vld [vmem:[#allocation7 + $0x740] sm:$0xff]
    %v304 = vld [vmem:[#allocation7 + $0x748] sm:$0xff]
    %v305 = vld [vmem:[#allocation7 + $0x750] sm:$0xff]
    %v306 = vld [vmem:[#allocation7 + $0x758] sm:$0xff]
    %v307 = vld [vmem:[#allocation7 + $0x760] sm:$0xff]
    %v308 = vld [vmem:[#allocation7 + $0x768] sm:$0xff]
    %v309 = vld [vmem:[#allocation7 + $0x770] sm:$0xff]
    %v310 = vld [vmem:[#allocation7 + $0x778] sm:$0xff]
    %v311 = vld [vmem:[#allocation7 + $0x780] sm:$0xff]
    %v312 = vld [vmem:[#allocation7 + $0x788] sm:$0xff]
    %v313 = vld [vmem:[#allocation7 + $0x790] sm:$0xff]
    %v314 = vld [vmem:[#allocation7 + $0x798] sm:$0xff]
    %v315 = vld [vmem:[#allocation7 + $0x7a0] sm:$0xff]
    %v316 = vld [vmem:[#allocation7 + $0x7a8] sm:$0xff]
    %v317 = vld [vmem:[#allocation7 + $0x7b0] sm:$0xff]
    %v318 = vld [vmem:[#allocation7 + $0x7b8] sm:$0xff]
    %v319 = vld [vmem:[#allocation7 + $0x7c0] sm:$0xff]
    %v320 = vld [vmem:[#allocation7 + $0x7c8] sm:$0xff]
    %v321 = vld [vmem:[#allocation7 + $0x7d0] sm:$0xff]
    %v322 = vld [vmem:[#allocation7 + $0x7d8] sm:$0xff]
    %v323 = vld [vmem:[#allocation7 + $0x7e0] sm:$0xff]
    %v324 = vld [vmem:[#allocation7 + $0x7e8] sm:$0xff]
    %v325 = vld [vmem:[#allocation7 + $0x7f0] sm:$0xff]
    %v326 = vld [vmem:[#allocation7 + $0x7f8] sm:$0xff]
    %v455 = vunpack.c.l.b16 %v199
    %v456 = vunpack.c.h.b16 %v199
    %v457 = vunpack.c.l.b16 %v200
    %v458 = vunpack.c.h.b16 %v200
    %v459 = vunpack.c.l.b16 %v201
    %v460 = vunpack.c.h.b16 %v201
    %v461 = vunpack.c.l.b16 %v202
    %v462 = vunpack.c.h.b16 %v202
    %v463 = vunpack.c.l.b16 %v203
    %v464 = vunpack.c.h.b16 %v203
    %v465 = vunpack.c.l.b16 %v204
    %v466 = vunpack.c.h.b16 %v204
    %v467 = vunpack.c.l.b16 %v205
    %v468 = vunpack.c.h.b16 %v205
    %v469 = vunpack.c.l.b16 %v206
    %v470 = vunpack.c.h.b16 %v206
    %v471 = vunpack.c.l.b16 %v207
    %v472 = vunpack.c.h.b16 %v207
    %v473 = vunpack.c.l.b16 %v208
    %v474 = vunpack.c.h.b16 %v208
    %v475 = vunpack.c.l.b16 %v209
    %v476 = vunpack.c.h.b16 %v209
    %v477 = vunpack.c.l.b16 %v210
    %v478 = vunpack.c.h.b16 %v210
    %v479 = vunpack.c.l.b16 %v211
    %v480 = vunpack.c.h.b16 %v211
    %v481 = vunpack.c.l.b16 %v212
    %v482 = vunpack.c.h.b16 %v212
    %v483 = vunpack.c.l.b16 %v213
    %v484 = vunpack.c.h.b16 %v213
    %v485 = vunpack.c.l.b16 %v214
    %v486 = vunpack.c.h.b16 %v214
    %v487 = vunpack.c.l.b16 %v215
    %v488 = vunpack.c.h.b16 %v215
    %v489 = vunpack.c.l.b16 %v216
    %v490 = vunpack.c.h.b16 %v216
    %v491 = vunpack.c.l.b16 %v217
    %v492 = vunpack.c.h.b16 %v217
    %v493 = vunpack.c.l.b16 %v218
    %v494 = vunpack.c.h.b16 %v218
    %v495 = vunpack.c.l.b16 %v219
    %v496 = vunpack.c.h.b16 %v219
    %v497 = vunpack.c.l.b16 %v220
    %v498 = vunpack.c.h.b16 %v220
    %v499 = vunpack.c.l.b16 %v221
    %v500 = vunpack.c.h.b16 %v221
    %v501 = vunpack.c.l.b16 %v222
    %v502 = vunpack.c.h.b16 %v222
    %v503 = vunpack.c.l.b16 %v223
    %v504 = vunpack.c.h.b16 %v223
    %v505 = vunpack.c.l.b16 %v224
    %v506 = vunpack.c.h.b16 %v224
    %v507 = vunpack.c.l.b16 %v225
    %v508 = vunpack.c.h.b16 %v225
    %v509 = vunpack.c.l.b16 %v226
    %v510 = vunpack.c.h.b16 %v226
    %v511 = vunpack.c.l.b16 %v227
    %v512 = vunpack.c.h.b16 %v227
    %v513 = vunpack.c.l.b16 %v228
    %v514 = vunpack.c.h.b16 %v228
    %v515 = vunpack.c.l.b16 %v229
    %v516 = vunpack.c.h.b16 %v229
    %v517 = vunpack.c.l.b16 %v230
    %v518 = vunpack.c.h.b16 %v230
    %v519 = vunpack.c.l.b16 %v231
    %v520 = vunpack.c.h.b16 %v231
    %v521 = vunpack.c.l.b16 %v232
    %v522 = vunpack.c.h.b16 %v232
    %v523 = vunpack.c.l.b16 %v233
    %v524 = vunpack.c.h.b16 %v233
    %v525 = vunpack.c.l.b16 %v234
    %v526 = vunpack.c.h.b16 %v234
    %v527 = vunpack.c.l.b16 %v235
    %v528 = vunpack.c.h.b16 %v235
    %v529 = vunpack.c.l.b16 %v236
    %v530 = vunpack.c.h.b16 %v236
    %v531 = vunpack.c.l.b16 %v237
    %v532 = vunpack.c.h.b16 %v237
    %v533 = vunpack.c.l.b16 %v238
    %v534 = vunpack.c.h.b16 %v238
    %v535 = vunpack.c.l.b16 %v239
    %v536 = vunpack.c.h.b16 %v239
    %v537 = vunpack.c.l.b16 %v240
    %v538 = vunpack.c.h.b16 %v240
    %v539 = vunpack.c.l.b16 %v241
    %v540 = vunpack.c.h.b16 %v241
    %v541 = vunpack.c.l.b16 %v242
    %v542 = vunpack.c.h.b16 %v242
    %v543 = vunpack.c.l.b16 %v243
    %v544 = vunpack.c.h.b16 %v243
    %v545 = vunpack.c.l.b16 %v244
    %v546 = vunpack.c.h.b16 %v244
    %v547 = vunpack.c.l.b16 %v245
    %v548 = vunpack.c.h.b16 %v245
    %v549 = vunpack.c.l.b16 %v246
    %v550 = vunpack.c.h.b16 %v246
    %v551 = vunpack.c.l.b16 %v247
    %v552 = vunpack.c.h.b16 %v247
    %v553 = vunpack.c.l.b16 %v248
    %v554 = vunpack.c.h.b16 %v248
    %v555 = vunpack.c.l.b16 %v249
    %v556 = vunpack.c.h.b16 %v249
    %v557 = vunpack.c.l.b16 %v250
    %v558 = vunpack.c.h.b16 %v250
    %v559 = vunpack.c.l.b16 %v251
    %v560 = vunpack.c.h.b16 %v251
    %v561 = vunpack.c.l.b16 %v252
    %v562 = vunpack.c.h.b16 %v252
    %v563 = vunpack.c.l.b16 %v253
    %v564 = vunpack.c.h.b16 %v253
    %v565 = vunpack.c.l.b16 %v254
    %v566 = vunpack.c.h.b16 %v254
    %v567 = vunpack.c.l.b16 %v255
    %v568 = vunpack.c.h.b16 %v255
    %v569 = vunpack.c.l.b16 %v256
    %v570 = vunpack.c.h.b16 %v256
    %v571 = vunpack.c.l.b16 %v257
    %v572 = vunpack.c.h.b16 %v257
    %v573 = vunpack.c.l.b16 %v258
    %v574 = vunpack.c.h.b16 %v258
    %v575 = vunpack.c.l.b16 %v259
    %v576 = vunpack.c.h.b16 %v259
    %v577 = vunpack.c.l.b16 %v260
    %v578 = vunpack.c.h.b16 %v260
    %v579 = vunpack.c.l.b16 %v261
    %v580 = vunpack.c.h.b16 %v261
    %v581 = vunpack.c.l.b16 %v262
    %v582 = vunpack.c.h.b16 %v262
    %v583 = vunpack.c.l.b16 %v263
    %v584 = vunpack.c.h.b16 %v263
    %v585 = vunpack.c.l.b16 %v264
    %v586 = vunpack.c.h.b16 %v264
    %v587 = vunpack.c.l.b16 %v265
    %v588 = vunpack.c.h.b16 %v265
    %v589 = vunpack.c.l.b16 %v266
    %v590 = vunpack.c.h.b16 %v266
    %v591 = vunpack.c.l.b16 %v267
    %v592 = vunpack.c.h.b16 %v267
    %v593 = vunpack.c.l.b16 %v268
    %v594 = vunpack.c.h.b16 %v268
    %v595 = vunpack.c.l.b16 %v269
    %v596 = vunpack.c.h.b16 %v269
    %v597 = vunpack.c.l.b16 %v270
    %v598 = vunpack.c.h.b16 %v270
    %v599 = vunpack.c.l.b16 %v271
    %v600 = vunpack.c.h.b16 %v271
    %v601 = vunpack.c.l.b16 %v272
    %v602 = vunpack.c.h.b16 %v272
    %v603 = vunpack.c.l.b16 %v273
    %v604 = vunpack.c.h.b16 %v273
    %v605 = vunpack.c.l.b16 %v274
    %v606 = vunpack.c.h.b16 %v274
    %v607 = vunpack.c.l.b16 %v275
    %v608 = vunpack.c.h.b16 %v275
    %v609 = vunpack.c.l.b16 %v276
    %v610 = vunpack.c.h.b16 %v276
    %v611 = vunpack.c.l.b16 %v277
    %v612 = vunpack.c.h.b16 %v277
    %v613 = vunpack.c.l.b16 %v278
    %v614 = vunpack.c.h.b16 %v278
    %v615 = vunpack.c.l.b16 %v279
    %v616 = vunpack.c.h.b16 %v279
    %v617 = vunpack.c.l.b16 %v280
    %v618 = vunpack.c.h.b16 %v280
    %v619 = vunpack.c.l.b16 %v281
    %v620 = vunpack.c.h.b16 %v281
    %v621 = vunpack.c.l.b16 %v282
    %v622 = vunpack.c.h.b16 %v282
    %v623 = vunpack.c.l.b16 %v283
    %v624 = vunpack.c.h.b16 %v283
    %v625 = vunpack.c.l.b16 %v284
    %v626 = vunpack.c.h.b16 %v284
    %v627 = vunpack.c.l.b16 %v285
    %v628 = vunpack.c.h.b16 %v285
    %v629 = vunpack.c.l.b16 %v286
    %v630 = vunpack.c.h.b16 %v286
    %v631 = vunpack.c.l.b16 %v287
    %v632 = vunpack.c.h.b16 %v287
    %v633 = vunpack.c.l.b16 %v288
    %v634 = vunpack.c.h.b16 %v288
    %v635 = vunpack.c.l.b16 %v289
    %v636 = vunpack.c.h.b16 %v289
    %v637 = vunpack.c.l.b16 %v290
    %v638 = vunpack.c.h.b16 %v290
    %v639 = vunpack.c.l.b16 %v291
    %v640 = vunpack.c.h.b16 %v291
    %v641 = vunpack.c.l.b16 %v292
    %v642 = vunpack.c.h.b16 %v292
    %v643 = vunpack.c.l.b16 %v293
    %v644 = vunpack.c.h.b16 %v293
    %v645 = vunpack.c.l.b16 %v294
    %v646 = vunpack.c.h.b16 %v294
    %v647 = vunpack.c.l.b16 %v295
    %v648 = vunpack.c.h.b16 %v295
    %v649 = vunpack.c.l.b16 %v296
    %v650 = vunpack.c.h.b16 %v296
    %v651 = vunpack.c.l.b16 %v297
    %v652 = vunpack.c.h.b16 %v297
    %v653 = vunpack.c.l.b16 %v298
    %v654 = vunpack.c.h.b16 %v298
    %v655 = vunpack.c.l.b16 %v299
    %v656 = vunpack.c.h.b16 %v299
    %v657 = vunpack.c.l.b16 %v300
    %v658 = vunpack.c.h.b16 %v300
    %v659 = vunpack.c.l.b16 %v301
    %v660 = vunpack.c.h.b16 %v301
    %v661 = vunpack.c.l.b16 %v302
    %v662 = vunpack.c.h.b16 %v302
    %v663 = vunpack.c.l.b16 %v303
    %v664 = vunpack.c.h.b16 %v303
    %v665 = vunpack.c.l.b16 %v304
    %v666 = vunpack.c.h.b16 %v304
    %v667 = vunpack.c.l.b16 %v305
    %v668 = vunpack.c.h.b16 %v305
    %v669 = vunpack.c.l.b16 %v306
    %v670 = vunpack.c.h.b16 %v306
    %v671 = vunpack.c.l.b16 %v307
    %v672 = vunpack.c.h.b16 %v307
    %v673 = vunpack.c.l.b16 %v308
    %v674 = vunpack.c.h.b16 %v308
    %v675 = vunpack.c.l.b16 %v309
    %v676 = vunpack.c.h.b16 %v309
    %v677 = vunpack.c.l.b16 %v310
    %v678 = vunpack.c.h.b16 %v310
    %v679 = vunpack.c.l.b16 %v311
    %v680 = vunpack.c.h.b16 %v311
    %v681 = vunpack.c.l.b16 %v312
    %v682 = vunpack.c.h.b16 %v312
    %v683 = vunpack.c.l.b16 %v313
    %v684 = vunpack.c.h.b16 %v313
    %v685 = vunpack.c.l.b16 %v314
    %v686 = vunpack.c.h.b16 %v314
    %v687 = vunpack.c.l.b16 %v315
    %v688 = vunpack.c.h.b16 %v315
    %v689 = vunpack.c.l.b16 %v316
    %v690 = vunpack.c.h.b16 %v316
    %v691 = vunpack.c.l.b16 %v317
    %v692 = vunpack.c.h.b16 %v317
    %v693 = vunpack.c.l.b16 %v318
    %v694 = vunpack.c.h.b16 %v318
    %v695 = vunpack.c.l.b16 %v319
    %v696 = vunpack.c.h.b16 %v319
    %v697 = vunpack.c.l.b16 %v320
    %v698 = vunpack.c.h.b16 %v320
    %v699 = vunpack.c.l.b16 %v321
    %v700 = vunpack.c.h.b16 %v321
    %v701 = vunpack.c.l.b16 %v322
    %v702 = vunpack.c.h.b16 %v322
    %v703 = vunpack.c.l.b16 %v323
    %v704 = vunpack.c.h.b16 %v323
    %v705 = vunpack.c.l.b16 %v324
    %v706 = vunpack.c.h.b16 %v324
    %v707 = vunpack.c.l.b16 %v325
    %v708 = vunpack.c.h.b16 %v325
    %v709 = vunpack.c.l.b16 %v326
    %v710 = vunpack.c.h.b16 %v326
    %v711 = vpack.c.b16 %v463, %v455
    %v712 = vpack.c.b16 %v464, %v456
    %v713 = vpack.c.b16 %v465, %v457
    %v714 = vpack.c.b16 %v466, %v458
    %v715 = vpack.c.b16 %v467, %v459
    %v716 = vpack.c.b16 %v468, %v460
    %v717 = vpack.c.b16 %v469, %v461
    %v718 = vpack.c.b16 %v470, %v462
    %v719 = vpack.c.b16 %v479, %v471
    %v720 = vpack.c.b16 %v480, %v472
    %v721 = vpack.c.b16 %v481, %v473
    %v722 = vpack.c.b16 %v482, %v474
    %v723 = vpack.c.b16 %v483, %v475
    %v724 = vpack.c.b16 %v484, %v476
    %v725 = vpack.c.b16 %v485, %v477
    %v726 = vpack.c.b16 %v486, %v478
    %v727 = vpack.c.b16 %v495, %v487
    %v728 = vpack.c.b16 %v496, %v488
    %v729 = vpack.c.b16 %v497, %v489
    %v730 = vpack.c.b16 %v498, %v490
    %v731 = vpack.c.b16 %v499, %v491
    %v732 = vpack.c.b16 %v500, %v492
    %v733 = vpack.c.b16 %v501, %v493
    %v734 = vpack.c.b16 %v502, %v494
    %v735 = vpack.c.b16 %v511, %v503
    %v736 = vpack.c.b16 %v512, %v504
    %v737 = vpack.c.b16 %v513, %v505
    %v738 = vpack.c.b16 %v514, %v506
    %v739 = vpack.c.b16 %v515, %v507
    %v740 = vpack.c.b16 %v516, %v508
    %v741 = vpack.c.b16 %v517, %v509
    %v742 = vpack.c.b16 %v518, %v510
    %v743 = vpack.c.b16 %v527, %v519
    %v744 = vpack.c.b16 %v528, %v520
    %v745 = vpack.c.b16 %v529, %v521
    %v746 = vpack.c.b16 %v530, %v522
    %v747 = vpack.c.b16 %v531, %v523
    %v748 = vpack.c.b16 %v532, %v524
    %v749 = vpack.c.b16 %v533, %v525
    %v750 = vpack.c.b16 %v534, %v526
    %v751 = vpack.c.b16 %v543, %v535
    %v752 = vpack.c.b16 %v544, %v536
    %v753 = vpack.c.b16 %v545, %v537
    %v754 = vpack.c.b16 %v546, %v538
    %v755 = vpack.c.b16 %v547, %v539
    %v756 = vpack.c.b16 %v548, %v540
    %v757 = vpack.c.b16 %v549, %v541
    %v758 = vpack.c.b16 %v550, %v542
    %v759 = vpack.c.b16 %v559, %v551
    %v760 = vpack.c.b16 %v560, %v552
    %v761 = vpack.c.b16 %v561, %v553
    %v762 = vpack.c.b16 %v562, %v554
    %v763 = vpack.c.b16 %v563, %v555
    %v764 = vpack.c.b16 %v564, %v556
    %v765 = vpack.c.b16 %v565, %v557
    %v766 = vpack.c.b16 %v566, %v558
    %v767 = vpack.c.b16 %v575, %v567
    %v768 = vpack.c.b16 %v576, %v568
    %v769 = vpack.c.b16 %v577, %v569
    %v770 = vpack.c.b16 %v578, %v570
    %v771 = vpack.c.b16 %v579, %v571
    %v772 = vpack.c.b16 %v580, %v572
    %v773 = vpack.c.b16 %v581, %v573
    %v774 = vpack.c.b16 %v582, %v574
    %v775 = vpack.c.b16 %v591, %v583
    %v776 = vpack.c.b16 %v592, %v584
    %v777 = vpack.c.b16 %v593, %v585
    %v778 = vpack.c.b16 %v594, %v586
    %v779 = vpack.c.b16 %v595, %v587
    %v780 = vpack.c.b16 %v596, %v588
    %v781 = vpack.c.b16 %v597, %v589
    %v782 = vpack.c.b16 %v598, %v590
    %v783 = vpack.c.b16 %v607, %v599
    %v784 = vpack.c.b16 %v608, %v600
    %v785 = vpack.c.b16 %v609, %v601
    %v786 = vpack.c.b16 %v610, %v602
    %v787 = vpack.c.b16 %v611, %v603
    %v788 = vpack.c.b16 %v612, %v604
    %v789 = vpack.c.b16 %v613, %v605
    %v790 = vpack.c.b16 %v614, %v606
    %v791 = vpack.c.b16 %v623, %v615
    %v792 = vpack.c.b16 %v624, %v616
    %v793 = vpack.c.b16 %v625, %v617
    %v794 = vpack.c.b16 %v626, %v618
    %v795 = vpack.c.b16 %v627, %v619
    %v796 = vpack.c.b16 %v628, %v620
    %v797 = vpack.c.b16 %v629, %v621
    %v798 = vpack.c.b16 %v630, %v622
    %v799 = vpack.c.b16 %v639, %v631
    %v800 = vpack.c.b16 %v640, %v632
    %v801 = vpack.c.b16 %v641, %v633
    %v802 = vpack.c.b16 %v642, %v634
    %v803 = vpack.c.b16 %v643, %v635
    %v804 = vpack.c.b16 %v644, %v636
    %v805 = vpack.c.b16 %v645, %v637
    %v806 = vpack.c.b16 %v646, %v638
    %v807 = vpack.c.b16 %v655, %v647
    %v808 = vpack.c.b16 %v656, %v648
    %v809 = vpack.c.b16 %v657, %v649
    %v810 = vpack.c.b16 %v658, %v650
    %v811 = vpack.c.b16 %v659, %v651
    %v812 = vpack.c.b16 %v660, %v652
    %v813 = vpack.c.b16 %v661, %v653
    %v814 = vpack.c.b16 %v662, %v654
    %v815 = vpack.c.b16 %v671, %v663
    %v816 = vpack.c.b16 %v672, %v664
    %v817 = vpack.c.b16 %v673, %v665
    %v818 = vpack.c.b16 %v674, %v666
    %v819 = vpack.c.b16 %v675, %v667
    %v820 = vpack.c.b16 %v676, %v668
    %v821 = vpack.c.b16 %v677, %v669
    %v822 = vpack.c.b16 %v678, %v670
    %v823 = vpack.c.b16 %v687, %v679
    %v824 = vpack.c.b16 %v688, %v680
    %v825 = vpack.c.b16 %v689, %v681
    %v826 = vpack.c.b16 %v690, %v682
    %v827 = vpack.c.b16 %v691, %v683
    %v828 = vpack.c.b16 %v692, %v684
    %v829 = vpack.c.b16 %v693, %v685
    %v830 = vpack.c.b16 %v694, %v686
    %v831 = vpack.c.b16 %v703, %v695
    %v832 = vpack.c.b16 %v704, %v696
    %v833 = vpack.c.b16 %v705, %v697
    %v834 = vpack.c.b16 %v706, %v698
    %v835 = vpack.c.b16 %v707, %v699
    %v836 = vpack.c.b16 %v708, %v700
    %v837 = vpack.c.b16 %v709, %v701
    %v838 = vpack.c.b16 %v710, %v702
    %967 = vmatpush.bf16.msra.mxu0 %v767
    %968 = vmatpush.bf16.msra.mxu0 %v759
    %969 = vmatpush.bf16.msra.mxu0 %v751
    %970 = vmatpush.bf16.msra.mxu0 %v743
    %971 = vmatpush.bf16.msra.mxu0 %v735
    %972 = vmatpush.bf16.msra.mxu0 %v727
    %973 = vmatpush.bf16.msra.mxu0 %v719
    %974 = vmatpush.bf16.msra.mxu0 %v711
    %975 = vmatmul.bf16.gmra.mxu0 %v69
    %v976 = vpop.f32.mrf.mxu0
    %v977 = vadd.f32 0.0, %v976
    %v978 = vpop.f32.mrf.mxu0
    %979 = vdwg.mxu0
    %980 = vmatpush.bf16.msra.mxu0 %v831
    %981 = vmatpush.bf16.msra.mxu0 %v823
    %982 = vmatpush.bf16.msra.mxu0 %v815
    %983 = vmatpush.bf16.msra.mxu0 %v807
    %984 = vmatpush.bf16.msra.mxu0 %v799
    %985 = vmatpush.bf16.msra.mxu0 %v791
    %986 = vmatpush.bf16.msra.mxu0 %v783
    %987 = vmatpush.bf16.msra.mxu0 %v775
    %988 = vmatmul.bf16.gmra.mxu0 %v70
    %v989 = vpop.f32.mrf.mxu0
    %v990 = vadd.f32 %v977, %v989
    %v991 = vpop.f32.mrf.mxu0
    %992 = vdwg.mxu0
    %993 = vmatpush.bf16.msra.mxu0 %v768
    %994 = vmatpush.bf16.msra.mxu0 %v760
    %995 = vmatpush.bf16.msra.mxu0 %v752
    %996 = vmatpush.bf16.msra.mxu0 %v744
    %997 = vmatpush.bf16.msra.mxu0 %v736
    %998 = vmatpush.bf16.msra.mxu0 %v728
    %999 = vmatpush.bf16.msra.mxu0 %v720
    %1000 = vmatpush.bf16.msra.mxu0 %v712
    %1001 = vmatmul.bf16.gmra.mxu0 %v69
    %v1002 = vpop.f32.mrf.mxu0
    %v1003 = vadd.f32 0.0, %v1002
    %v1004 = vpop.f32.mrf.mxu0
    %1005 = vdwg.mxu0
    %1006 = vmatpush.bf16.msra.mxu0 %v832
    %1007 = vmatpush.bf16.msra.mxu0 %v824
    %1008 = vmatpush.bf16.msra.mxu0 %v816
    %1009 = vmatpush.bf16.msra.mxu0 %v808
    %1010 = vmatpush.bf16.msra.mxu0 %v800
    %1011 = vmatpush.bf16.msra.mxu0 %v792
    %1012 = vmatpush.bf16.msra.mxu0 %v784
    %1013 = vmatpush.bf16.msra.mxu0 %v776
    %1014 = vmatmul.bf16.gmra.mxu0 %v70
    %v1015 = vpop.f32.mrf.mxu0
    %v1016 = vadd.f32 %v1003, %v1015
    %v1017 = vpop.f32.mrf.mxu0
    %1018 = vdwg.mxu0
    %1019 = vmatpush.bf16.msra.mxu0 %v769
    %1020 = vmatpush.bf16.msra.mxu0 %v761
    %1021 = vmatpush.bf16.msra.mxu0 %v753
    %1022 = vmatpush.bf16.msra.mxu0 %v745
    %1023 = vmatpush.bf16.msra.mxu0 %v737
    %1024 = vmatpush.bf16.msra.mxu0 %v729
    %1025 = vmatpush.bf16.msra.mxu0 %v721
    %1026 = vmatpush.bf16.msra.mxu0 %v713
    %1027 = vmatmul.bf16.gmra.mxu0 %v69
    %v1028 = vpop.f32.mrf.mxu0
    %v1029 = vadd.f32 0.0, %v1028
    %v1030 = vpop.f32.mrf.mxu0
    %1031 = vdwg.mxu0
    %1032 = vmatpush.bf16.msra.mxu0 %v833
    %1033 = vmatpush.bf16.msra.mxu0 %v825
    %1034 = vmatpush.bf16.msra.mxu0 %v817
    %1035 = vmatpush.bf16.msra.mxu0 %v809
    %1036 = vmatpush.bf16.msra.mxu0 %v801
    %1037 = vmatpush.bf16.msra.mxu0 %v793
    %1038 = vmatpush.bf16.msra.mxu0 %v785
    %1039 = vmatpush.bf16.msra.mxu0 %v777
    %1040 = vmatmul.bf16.gmra.mxu0 %v70
    %v1041 = vpop.f32.mrf.mxu0
    %v1042 = vadd.f32 %v1029, %v1041
    %v1043 = vpop.f32.mrf.mxu0
    %1044 = vdwg.mxu0
    %1045 = vmatpush.bf16.msra.mxu0 %v770
    %1046 = vmatpush.bf16.msra.mxu0 %v762
    %1047 = vmatpush.bf16.msra.mxu0 %v754
    %1048 = vmatpush.bf16.msra.mxu0 %v746
    %1049 = vmatpush.bf16.msra.mxu0 %v738
    %1050 = vmatpush.bf16.msra.mxu0 %v730
    %1051 = vmatpush.bf16.msra.mxu0 %v722
    %1052 = vmatpush.bf16.msra.mxu0 %v714
    %1053 = vmatmul.bf16.gmra.mxu0 %v69
    %v1054 = vpop.f32.mrf.mxu0
    %v1055 = vadd.f32 0.0, %v1054
    %v1056 = vpop.f32.mrf.mxu0
    %1057 = vdwg.mxu0
    %1058 = vmatpush.bf16.msra.mxu0 %v834
    %1059 = vmatpush.bf16.msra.mxu0 %v826
    %1060 = vmatpush.bf16.msra.mxu0 %v818
    %1061 = vmatpush.bf16.msra.mxu0 %v810
    %1062 = vmatpush.bf16.msra.mxu0 %v802
    %1063 = vmatpush.bf16.msra.mxu0 %v794
    %1064 = vmatpush.bf16.msra.mxu0 %v786
    %1065 = vmatpush.bf16.msra.mxu0 %v778
    %1066 = vmatmul.bf16.gmra.mxu0 %v70
    %v1067 = vpop.f32.mrf.mxu0
    %v1068 = vadd.f32 %v1055, %v1067
    %v1069 = vpop.f32.mrf.mxu0
    %1070 = vdwg.mxu0
    %1071 = vmatpush.bf16.msra.mxu0 %v771
    %1072 = vmatpush.bf16.msra.mxu0 %v763
    %1073 = vmatpush.bf16.msra.mxu0 %v755
    %1074 = vmatpush.bf16.msra.mxu0 %v747
    %1075 = vmatpush.bf16.msra.mxu0 %v739
    %1076 = vmatpush.bf16.msra.mxu0 %v731
    %1077 = vmatpush.bf16.msra.mxu0 %v723
    %1078 = vmatpush.bf16.msra.mxu0 %v715
    %1079 = vmatmul.bf16.gmra.mxu0 %v69
    %v1080 = vpop.f32.mrf.mxu0
    %v1081 = vadd.f32 0.0, %v1080
    %v1082 = vpop.f32.mrf.mxu0
    %1083 = vdwg.mxu0
    %1084 = vmatpush.bf16.msra.mxu0 %v835
    %1085 = vmatpush.bf16.msra.mxu0 %v827
    %1086 = vmatpush.bf16.msra.mxu0 %v819
    %1087 = vmatpush.bf16.msra.mxu0 %v811
    %1088 = vmatpush.bf16.msra.mxu0 %v803
    %1089 = vmatpush.bf16.msra.mxu0 %v795
    %1090 = vmatpush.bf16.msra.mxu0 %v787
    %1091 = vmatpush.bf16.msra.mxu0 %v779
    %1092 = vmatmul.bf16.gmra.mxu0 %v70
    %v1093 = vpop.f32.mrf.mxu0
    %v1094 = vadd.f32 %v1081, %v1093
    %v1095 = vpop.f32.mrf.mxu0
    %1096 = vdwg.mxu0
    %1097 = vmatpush.bf16.msra.mxu0 %v772
    %1098 = vmatpush.bf16.msra.mxu0 %v764
    %1099 = vmatpush.bf16.msra.mxu0 %v756
    %1100 = vmatpush.bf16.msra.mxu0 %v748
    %1101 = vmatpush.bf16.msra.mxu0 %v740
    %1102 = vmatpush.bf16.msra.mxu0 %v732
    %1103 = vmatpush.bf16.msra.mxu0 %v724
    %1104 = vmatpush.bf16.msra.mxu0 %v716
    %1105 = vmatmul.bf16.gmra.mxu0 %v69
    %v1106 = vpop.f32.mrf.mxu0
    %v1107 = vadd.f32 0.0, %v1106
    %v1108 = vpop.f32.mrf.mxu0
    %1109 = vdwg.mxu0
    %1110 = vmatpush.bf16.msra.mxu0 %v836
    %1111 = vmatpush.bf16.msra.mxu0 %v828
    %1112 = vmatpush.bf16.msra.mxu0 %v820
    %1113 = vmatpush.bf16.msra.mxu0 %v812
    %1114 = vmatpush.bf16.msra.mxu0 %v804
    %1115 = vmatpush.bf16.msra.mxu0 %v796
    %1116 = vmatpush.bf16.msra.mxu0 %v788
    %1117 = vmatpush.bf16.msra.mxu0 %v780
    %1118 = vmatmul.bf16.gmra.mxu0 %v70
    %v1119 = vpop.f32.mrf.mxu0
    %v1120 = vadd.f32 %v1107, %v1119
    %v1121 = vpop.f32.mrf.mxu0
    %1122 = vdwg.mxu0
    %1123 = vmatpush.bf16.msra.mxu0 %v773
    %1124 = vmatpush.bf16.msra.mxu0 %v765
    %1125 = vmatpush.bf16.msra.mxu0 %v757
    %1126 = vmatpush.bf16.msra.mxu0 %v749
    %1127 = vmatpush.bf16.msra.mxu0 %v741
    %1128 = vmatpush.bf16.msra.mxu0 %v733
    %1129 = vmatpush.bf16.msra.mxu0 %v725
    %1130 = vmatpush.bf16.msra.mxu0 %v717
    %1131 = vmatmul.bf16.gmra.mxu0 %v69
    %v1132 = vpop.f32.mrf.mxu0
    %v1133 = vadd.f32 0.0, %v1132
    %v1134 = vpop.f32.mrf.mxu0
    %1135 = vdwg.mxu0
    %1136 = vmatpush.bf16.msra.mxu0 %v837
    %1137 = vmatpush.bf16.msra.mxu0 %v829
    %1138 = vmatpush.bf16.msra.mxu0 %v821
    %1139 = vmatpush.bf16.msra.mxu0 %v813
    %1140 = vmatpush.bf16.msra.mxu0 %v805
    %1141 = vmatpush.bf16.msra.mxu0 %v797
    %1142 = vmatpush.bf16.msra.mxu0 %v789
    %1143 = vmatpush.bf16.msra.mxu0 %v781
    %1144 = vmatmul.bf16.gmra.mxu0 %v70
    %v1145 = vpop.f32.mrf.mxu0
    %v1146 = vadd.f32 %v1133, %v1145
    %v1147 = vpop.f32.mrf.mxu0
    %1148 = vdwg.mxu0
    %1149 = vmatpush.bf16.msra.mxu0 %v774
    %1150 = vmatpush.bf16.msra.mxu0 %v766
    %1151 = vmatpush.bf16.msra.mxu0 %v758
    %1152 = vmatpush.bf16.msra.mxu0 %v750
    %1153 = vmatpush.bf16.msra.mxu0 %v742
    %1154 = vmatpush.bf16.msra.mxu0 %v734
    %1155 = vmatpush.bf16.msra.mxu0 %v726
    %1156 = vmatpush.bf16.msra.mxu0 %v718
    %1157 = vmatmul.bf16.gmra.mxu0 %v69
    %v1158 = vpop.f32.mrf.mxu0
    %v1159 = vadd.f32 0.0, %v1158
    %v1160 = vpop.f32.mrf.mxu0
    %1161 = vdwg.mxu0
    %1162 = vmatpush.bf16.msra.mxu0 %v838
    %1163 = vmatpush.bf16.msra.mxu0 %v830
    %1164 = vmatpush.bf16.msra.mxu0 %v822
    %1165 = vmatpush.bf16.msra.mxu0 %v814
    %1166 = vmatpush.bf16.msra.mxu0 %v806
    %1167 = vmatpush.bf16.msra.mxu0 %v798
    %1168 = vmatpush.bf16.msra.mxu0 %v790
    %1169 = vmatpush.bf16.msra.mxu0 %v782
    %1170 = vmatmul.bf16.gmra.mxu0 %v70
    %v1171 = vpop.f32.mrf.mxu0
    %v1172 = vadd.f32 %v1159, %v1171
    %v1173 = vpop.f32.mrf.mxu0
    %1174 = vdwg.mxu0
    %v1176 = vunpack.c.l.b16 %v66
    %v1177 = vunpack.c.h.b16 %v66
    %v1178 = vpack.c.b16 %v1176, %v1176
    %v1179 = vpack.c.b16 %v1177, %v1177
    %v1310 = vunpack.c.l.b16 %v71
    %v1311 = vunpack.c.h.b16 %v71
    %v1312 = vunpack.c.l.b16 %v72
    %v1313 = vunpack.c.h.b16 %v72
    %v1314 = vunpack.c.l.b16 %v73
    %v1315 = vunpack.c.h.b16 %v73
    %v1316 = vunpack.c.l.b16 %v74
    %v1317 = vunpack.c.h.b16 %v74
    %v1318 = vunpack.c.l.b16 %v75
    %v1319 = vunpack.c.h.b16 %v75
    %v1320 = vunpack.c.l.b16 %v76
    %v1321 = vunpack.c.h.b16 %v76
    %v1322 = vunpack.c.l.b16 %v77
    %v1323 = vunpack.c.h.b16 %v77
    %v1324 = vunpack.c.l.b16 %v78
    %v1325 = vunpack.c.h.b16 %v78
    %v1326 = vunpack.c.l.b16 %v79
    %v1327 = vunpack.c.h.b16 %v79
    %v1328 = vunpack.c.l.b16 %v80
    %v1329 = vunpack.c.h.b16 %v80
    %v1330 = vunpack.c.l.b16 %v81
    %v1331 = vunpack.c.h.b16 %v81
    %v1332 = vunpack.c.l.b16 %v82
    %v1333 = vunpack.c.h.b16 %v82
    %v1334 = vunpack.c.l.b16 %v83
    %v1335 = vunpack.c.h.b16 %v83
    %v1336 = vunpack.c.l.b16 %v84
    %v1337 = vunpack.c.h.b16 %v84
    %v1338 = vunpack.c.l.b16 %v85
    %v1339 = vunpack.c.h.b16 %v85
    %v1340 = vunpack.c.l.b16 %v86
    %v1341 = vunpack.c.h.b16 %v86
    %v1342 = vunpack.c.l.b16 %v87
    %v1343 = vunpack.c.h.b16 %v87
    %v1344 = vunpack.c.l.b16 %v88
    %v1345 = vunpack.c.h.b16 %v88
    %v1346 = vunpack.c.l.b16 %v89
    %v1347 = vunpack.c.h.b16 %v89
    %v1348 = vunpack.c.l.b16 %v90
    %v1349 = vunpack.c.h.b16 %v90
    %v1350 = vunpack.c.l.b16 %v91
    %v1351 = vunpack.c.h.b16 %v91
    %v1352 = vunpack.c.l.b16 %v92
    %v1353 = vunpack.c.h.b16 %v92
    %v1354 = vunpack.c.l.b16 %v93
    %v1355 = vunpack.c.h.b16 %v93
    %v1356 = vunpack.c.l.b16 %v94
    %v1357 = vunpack.c.h.b16 %v94
    %v1358 = vunpack.c.l.b16 %v95
    %v1359 = vunpack.c.h.b16 %v95
    %v1360 = vunpack.c.l.b16 %v96
    %v1361 = vunpack.c.h.b16 %v96
    %v1362 = vunpack.c.l.b16 %v97
    %v1363 = vunpack.c.h.b16 %v97
    %v1364 = vunpack.c.l.b16 %v98
    %v1365 = vunpack.c.h.b16 %v98
    %v1366 = vunpack.c.l.b16 %v99
    %v1367 = vunpack.c.h.b16 %v99
    %v1368 = vunpack.c.l.b16 %v100
    %v1369 = vunpack.c.h.b16 %v100
    %v1370 = vunpack.c.l.b16 %v101
    %v1371 = vunpack.c.h.b16 %v101
    %v1372 = vunpack.c.l.b16 %v102
    %v1373 = vunpack.c.h.b16 %v102
    %v1374 = vunpack.c.l.b16 %v103
    %v1375 = vunpack.c.h.b16 %v103
    %v1376 = vunpack.c.l.b16 %v104
    %v1377 = vunpack.c.h.b16 %v104
    %v1378 = vunpack.c.l.b16 %v105
    %v1379 = vunpack.c.h.b16 %v105
    %v1380 = vunpack.c.l.b16 %v106
    %v1381 = vunpack.c.h.b16 %v106
    %v1382 = vunpack.c.l.b16 %v107
    %v1383 = vunpack.c.h.b16 %v107
    %v1384 = vunpack.c.l.b16 %v108
    %v1385 = vunpack.c.h.b16 %v108
    %v1386 = vunpack.c.l.b16 %v109
    %v1387 = vunpack.c.h.b16 %v109
    %v1388 = vunpack.c.l.b16 %v110
    %v1389 = vunpack.c.h.b16 %v110
    %v1390 = vunpack.c.l.b16 %v111
    %v1391 = vunpack.c.h.b16 %v111
    %v1392 = vunpack.c.l.b16 %v112
    %v1393 = vunpack.c.h.b16 %v112
    %v1394 = vunpack.c.l.b16 %v113
    %v1395 = vunpack.c.h.b16 %v113
    %v1396 = vunpack.c.l.b16 %v114
    %v1397 = vunpack.c.h.b16 %v114
    %v1398 = vunpack.c.l.b16 %v115
    %v1399 = vunpack.c.h.b16 %v115
    %v1400 = vunpack.c.l.b16 %v116
    %v1401 = vunpack.c.h.b16 %v116
    %v1402 = vunpack.c.l.b16 %v117
    %v1403 = vunpack.c.h.b16 %v117
    %v1404 = vunpack.c.l.b16 %v118
    %v1405 = vunpack.c.h.b16 %v118
    %v1406 = vunpack.c.l.b16 %v119
    %v1407 = vunpack.c.h.b16 %v119
    %v1408 = vunpack.c.l.b16 %v120
    %v1409 = vunpack.c.h.b16 %v120
    %v1410 = vunpack.c.l.b16 %v121
    %v1411 = vunpack.c.h.b16 %v121
    %v1412 = vunpack.c.l.b16 %v122
    %v1413 = vunpack.c.h.b16 %v122
    %v1414 = vunpack.c.l.b16 %v123
    %v1415 = vunpack.c.h.b16 %v123
    %v1416 = vunpack.c.l.b16 %v124
    %v1417 = vunpack.c.h.b16 %v124
    %v1418 = vunpack.c.l.b16 %v125
    %v1419 = vunpack.c.h.b16 %v125
    %v1420 = vunpack.c.l.b16 %v126
    %v1421 = vunpack.c.h.b16 %v126
    %v1422 = vunpack.c.l.b16 %v127
    %v1423 = vunpack.c.h.b16 %v127
    %v1424 = vunpack.c.l.b16 %v128
    %v1425 = vunpack.c.h.b16 %v128
    %v1426 = vunpack.c.l.b16 %v129
    %v1427 = vunpack.c.h.b16 %v129
    %v1428 = vunpack.c.l.b16 %v130
    %v1429 = vunpack.c.h.b16 %v130
    %v1430 = vunpack.c.l.b16 %v131
    %v1431 = vunpack.c.h.b16 %v131
    %v1432 = vunpack.c.l.b16 %v132
    %v1433 = vunpack.c.h.b16 %v132
    %v1434 = vunpack.c.l.b16 %v133
    %v1435 = vunpack.c.h.b16 %v133
    %v1436 = vunpack.c.l.b16 %v134
    %v1437 = vunpack.c.h.b16 %v134
    %v1438 = vunpack.c.l.b16 %v135
    %v1439 = vunpack.c.h.b16 %v135
    %v1440 = vunpack.c.l.b16 %v136
    %v1441 = vunpack.c.h.b16 %v136
    %v1442 = vunpack.c.l.b16 %v137
    %v1443 = vunpack.c.h.b16 %v137
    %v1444 = vunpack.c.l.b16 %v138
    %v1445 = vunpack.c.h.b16 %v138
    %v1446 = vunpack.c.l.b16 %v139
    %v1447 = vunpack.c.h.b16 %v139
    %v1448 = vunpack.c.l.b16 %v140
    %v1449 = vunpack.c.h.b16 %v140
    %v1450 = vunpack.c.l.b16 %v141
    %v1451 = vunpack.c.h.b16 %v141
    %v1452 = vunpack.c.l.b16 %v142
    %v1453 = vunpack.c.h.b16 %v142
    %v1454 = vunpack.c.l.b16 %v143
    %v1455 = vunpack.c.h.b16 %v143
    %v1456 = vunpack.c.l.b16 %v144
    %v1457 = vunpack.c.h.b16 %v144
    %v1458 = vunpack.c.l.b16 %v145
    %v1459 = vunpack.c.h.b16 %v145
    %v1460 = vunpack.c.l.b16 %v146
    %v1461 = vunpack.c.h.b16 %v146
    %v1462 = vunpack.c.l.b16 %v147
    %v1463 = vunpack.c.h.b16 %v147
    %v1464 = vunpack.c.l.b16 %v148
    %v1465 = vunpack.c.h.b16 %v148
    %v1466 = vunpack.c.l.b16 %v149
    %v1467 = vunpack.c.h.b16 %v149
    %v1468 = vunpack.c.l.b16 %v150
    %v1469 = vunpack.c.h.b16 %v150
    %v1470 = vunpack.c.l.b16 %v151
    %v1471 = vunpack.c.h.b16 %v151
    %v1472 = vunpack.c.l.b16 %v152
    %v1473 = vunpack.c.h.b16 %v152
    %v1474 = vunpack.c.l.b16 %v153
    %v1475 = vunpack.c.h.b16 %v153
    %v1476 = vunpack.c.l.b16 %v154
    %v1477 = vunpack.c.h.b16 %v154
    %v1478 = vunpack.c.l.b16 %v155
    %v1479 = vunpack.c.h.b16 %v155
    %v1480 = vunpack.c.l.b16 %v156
    %v1481 = vunpack.c.h.b16 %v156
    %v1482 = vunpack.c.l.b16 %v157
    %v1483 = vunpack.c.h.b16 %v157
    %v1484 = vunpack.c.l.b16 %v158
    %v1485 = vunpack.c.h.b16 %v158
    %v1486 = vunpack.c.l.b16 %v159
    %v1487 = vunpack.c.h.b16 %v159
    %v1488 = vunpack.c.l.b16 %v160
    %v1489 = vunpack.c.h.b16 %v160
    %v1490 = vunpack.c.l.b16 %v161
    %v1491 = vunpack.c.h.b16 %v161
    %v1492 = vunpack.c.l.b16 %v162
    %v1493 = vunpack.c.h.b16 %v162
    %v1494 = vunpack.c.l.b16 %v163
    %v1495 = vunpack.c.h.b16 %v163
    %v1496 = vunpack.c.l.b16 %v164
    %v1497 = vunpack.c.h.b16 %v164
    %v1498 = vunpack.c.l.b16 %v165
    %v1499 = vunpack.c.h.b16 %v165
    %v1500 = vunpack.c.l.b16 %v166
    %v1501 = vunpack.c.h.b16 %v166
    %v1502 = vunpack.c.l.b16 %v167
    %v1503 = vunpack.c.h.b16 %v167
    %v1504 = vunpack.c.l.b16 %v168
    %v1505 = vunpack.c.h.b16 %v168
    %v1506 = vunpack.c.l.b16 %v169
    %v1507 = vunpack.c.h.b16 %v169
    %v1508 = vunpack.c.l.b16 %v170
    %v1509 = vunpack.c.h.b16 %v170
    %v1510 = vunpack.c.l.b16 %v171
    %v1511 = vunpack.c.h.b16 %v171
    %v1512 = vunpack.c.l.b16 %v172
    %v1513 = vunpack.c.h.b16 %v172
    %v1514 = vunpack.c.l.b16 %v173
    %v1515 = vunpack.c.h.b16 %v173
    %v1516 = vunpack.c.l.b16 %v174
    %v1517 = vunpack.c.h.b16 %v174
    %v1518 = vunpack.c.l.b16 %v175
    %v1519 = vunpack.c.h.b16 %v175
    %v1520 = vunpack.c.l.b16 %v176
    %v1521 = vunpack.c.h.b16 %v176
    %v1522 = vunpack.c.l.b16 %v177
    %v1523 = vunpack.c.h.b16 %v177
    %v1524 = vunpack.c.l.b16 %v178
    %v1525 = vunpack.c.h.b16 %v178
    %v1526 = vunpack.c.l.b16 %v179
    %v1527 = vunpack.c.h.b16 %v179
    %v1528 = vunpack.c.l.b16 %v180
    %v1529 = vunpack.c.h.b16 %v180
    %v1530 = vunpack.c.l.b16 %v181
    %v1531 = vunpack.c.h.b16 %v181
    %v1532 = vunpack.c.l.b16 %v182
    %v1533 = vunpack.c.h.b16 %v182
    %v1534 = vunpack.c.l.b16 %v183
    %v1535 = vunpack.c.h.b16 %v183
    %v1536 = vunpack.c.l.b16 %v184
    %v1537 = vunpack.c.h.b16 %v184
    %v1538 = vunpack.c.l.b16 %v185
    %v1539 = vunpack.c.h.b16 %v185
    %v1540 = vunpack.c.l.b16 %v186
    %v1541 = vunpack.c.h.b16 %v186
    %v1542 = vunpack.c.l.b16 %v187
    %v1543 = vunpack.c.h.b16 %v187
    %v1544 = vunpack.c.l.b16 %v188
    %v1545 = vunpack.c.h.b16 %v188
    %v1546 = vunpack.c.l.b16 %v189
    %v1547 = vunpack.c.h.b16 %v189
    %v1548 = vunpack.c.l.b16 %v190
    %v1549 = vunpack.c.h.b16 %v190
    %v1550 = vunpack.c.l.b16 %v191
    %v1551 = vunpack.c.h.b16 %v191
    %v1552 = vunpack.c.l.b16 %v192
    %v1553 = vunpack.c.h.b16 %v192
    %v1554 = vunpack.c.l.b16 %v193
    %v1555 = vunpack.c.h.b16 %v193
    %v1556 = vunpack.c.l.b16 %v194
    %v1557 = vunpack.c.h.b16 %v194
    %v1558 = vunpack.c.l.b16 %v195
    %v1559 = vunpack.c.h.b16 %v195
    %v1560 = vunpack.c.l.b16 %v196
    %v1561 = vunpack.c.h.b16 %v196
    %v1562 = vunpack.c.l.b16 %v197
    %v1563 = vunpack.c.h.b16 %v197
    %v1564 = vunpack.c.l.b16 %v198
    %v1565 = vunpack.c.h.b16 %v198
    %v1566 = vpack.c.b16 %v1318, %v1310
    %v1567 = vpack.c.b16 %v1319, %v1311
    %v1568 = vpack.c.b16 %v1320, %v1312
    %v1569 = vpack.c.b16 %v1321, %v1313
    %v1570 = vpack.c.b16 %v1322, %v1314
    %v1571 = vpack.c.b16 %v1323, %v1315
    %v1572 = vpack.c.b16 %v1324, %v1316
    %v1573 = vpack.c.b16 %v1325, %v1317
    %v1574 = vpack.c.b16 %v1334, %v1326
    %v1575 = vpack.c.b16 %v1335, %v1327
    %v1576 = vpack.c.b16 %v1336, %v1328
    %v1577 = vpack.c.b16 %v1337, %v1329
    %v1578 = vpack.c.b16 %v1338, %v1330
    %v1579 = vpack.c.b16 %v1339, %v1331
    %v1580 = vpack.c.b16 %v1340, %v1332
    %v1581 = vpack.c.b16 %v1341, %v1333
    %v1582 = vpack.c.b16 %v1350, %v1342
    %v1583 = vpack.c.b16 %v1351, %v1343
    %v1584 = vpack.c.b16 %v1352, %v1344
    %v1585 = vpack.c.b16 %v1353, %v1345
    %v1586 = vpack.c.b16 %v1354, %v1346
    %v1587 = vpack.c.b16 %v1355, %v1347
    %v1588 = vpack.c.b16 %v1356, %v1348
    %v1589 = vpack.c.b16 %v1357, %v1349
    %v1590 = vpack.c.b16 %v1366, %v1358
    %v1591 = vpack.c.b16 %v1367, %v1359
    %v1592 = vpack.c.b16 %v1368, %v1360
    %v1593 = vpack.c.b16 %v1369, %v1361
    %v1594 = vpack.c.b16 %v1370, %v1362
    %v1595 = vpack.c.b16 %v1371, %v1363
    %v1596 = vpack.c.b16 %v1372, %v1364
    %v1597 = vpack.c.b16 %v1373, %v1365
    %v1598 = vpack.c.b16 %v1382, %v1374
    %v1599 = vpack.c.b16 %v1383, %v1375
    %v1600 = vpack.c.b16 %v1384, %v1376
    %v1601 = vpack.c.b16 %v1385, %v1377
    %v1602 = vpack.c.b16 %v1386, %v1378
    %v1603 = vpack.c.b16 %v1387, %v1379
    %v1604 = vpack.c.b16 %v1388, %v1380
    %v1605 = vpack.c.b16 %v1389, %v1381
    %v1606 = vpack.c.b16 %v1398, %v1390
    %v1607 = vpack.c.b16 %v1399, %v1391
    %v1608 = vpack.c.b16 %v1400, %v1392
    %v1609 = vpack.c.b16 %v1401, %v1393
    %v1610 = vpack.c.b16 %v1402, %v1394
    %v1611 = vpack.c.b16 %v1403, %v1395
    %v1612 = vpack.c.b16 %v1404, %v1396
    %v1613 = vpack.c.b16 %v1405, %v1397
    %v1614 = vpack.c.b16 %v1414, %v1406
    %v1615 = vpack.c.b16 %v1415, %v1407
    %v1616 = vpack.c.b16 %v1416, %v1408
    %v1617 = vpack.c.b16 %v1417, %v1409
    %v1618 = vpack.c.b16 %v1418, %v1410
    %v1619 = vpack.c.b16 %v1419, %v1411
    %v1620 = vpack.c.b16 %v1420, %v1412
    %v1621 = vpack.c.b16 %v1421, %v1413
    %v1622 = vpack.c.b16 %v1430, %v1422
    %v1623 = vpack.c.b16 %v1431, %v1423
    %v1624 = vpack.c.b16 %v1432, %v1424
    %v1625 = vpack.c.b16 %v1433, %v1425
    %v1626 = vpack.c.b16 %v1434, %v1426
    %v1627 = vpack.c.b16 %v1435, %v1427
    %v1628 = vpack.c.b16 %v1436, %v1428
    %v1629 = vpack.c.b16 %v1437, %v1429
    %v1630 = vpack.c.b16 %v1446, %v1438
    %v1631 = vpack.c.b16 %v1447, %v1439
    %v1632 = vpack.c.b16 %v1448, %v1440
    %v1633 = vpack.c.b16 %v1449, %v1441
    %v1634 = vpack.c.b16 %v1450, %v1442
    %v1635 = vpack.c.b16 %v1451, %v1443
    %v1636 = vpack.c.b16 %v1452, %v1444
    %v1637 = vpack.c.b16 %v1453, %v1445
    %v1638 = vpack.c.b16 %v1462, %v1454
    %v1639 = vpack.c.b16 %v1463, %v1455
    %v1640 = vpack.c.b16 %v1464, %v1456
    %v1641 = vpack.c.b16 %v1465, %v1457
    %v1642 = vpack.c.b16 %v1466, %v1458
    %v1643 = vpack.c.b16 %v1467, %v1459
    %v1644 = vpack.c.b16 %v1468, %v1460
    %v1645 = vpack.c.b16 %v1469, %v1461
    %v1646 = vpack.c.b16 %v1478, %v1470
    %v1647 = vpack.c.b16 %v1479, %v1471
    %v1648 = vpack.c.b16 %v1480, %v1472
    %v1649 = vpack.c.b16 %v1481, %v1473
    %v1650 = vpack.c.b16 %v1482, %v1474
    %v1651 = vpack.c.b16 %v1483, %v1475
    %v1652 = vpack.c.b16 %v1484, %v1476
    %v1653 = vpack.c.b16 %v1485, %v1477
    %v1654 = vpack.c.b16 %v1494, %v1486
    %v1655 = vpack.c.b16 %v1495, %v1487
    %v1656 = vpack.c.b16 %v1496, %v1488
    %v1657 = vpack.c.b16 %v1497, %v1489
    %v1658 = vpack.c.b16 %v1498, %v1490
    %v1659 = vpack.c.b16 %v1499, %v1491
    %v1660 = vpack.c.b16 %v1500, %v1492
    %v1661 = vpack.c.b16 %v1501, %v1493
    %v1662 = vpack.c.b16 %v1510, %v1502
    %v1663 = vpack.c.b16 %v1511, %v1503
    %v1664 = vpack.c.b16 %v1512, %v1504
    %v1665 = vpack.c.b16 %v1513, %v1505
    %v1666 = vpack.c.b16 %v1514, %v1506
    %v1667 = vpack.c.b16 %v1515, %v1507
    %v1668 = vpack.c.b16 %v1516, %v1508
    %v1669 = vpack.c.b16 %v1517, %v1509
    %v1670 = vpack.c.b16 %v1526, %v1518
    %v1671 = vpack.c.b16 %v1527, %v1519
    %v1672 = vpack.c.b16 %v1528, %v1520
    %v1673 = vpack.c.b16 %v1529, %v1521
    %v1674 = vpack.c.b16 %v1530, %v1522
    %v1675 = vpack.c.b16 %v1531, %v1523
    %v1676 = vpack.c.b16 %v1532, %v1524
    %v1677 = vpack.c.b16 %v1533, %v1525
    %v1678 = vpack.c.b16 %v1542, %v1534
    %v1679 = vpack.c.b16 %v1543, %v1535
    %v1680 = vpack.c.b16 %v1544, %v1536
    %v1681 = vpack.c.b16 %v1545, %v1537
    %v1682 = vpack.c.b16 %v1546, %v1538
    %v1683 = vpack.c.b16 %v1547, %v1539
    %v1684 = vpack.c.b16 %v1548, %v1540
    %v1685 = vpack.c.b16 %v1549, %v1541
    %v1686 = vpack.c.b16 %v1558, %v1550
    %v1687 = vpack.c.b16 %v1559, %v1551
    %v1688 = vpack.c.b16 %v1560, %v1552
    %v1689 = vpack.c.b16 %v1561, %v1553
    %v1690 = vpack.c.b16 %v1562, %v1554
    %v1691 = vpack.c.b16 %v1563, %v1555
    %v1692 = vpack.c.b16 %v1564, %v1556
    %v1693 = vpack.c.b16 %v1565, %v1557
    %1822 = vmatpush.bf16.msra.mxu0 %v1622
    %1823 = vmatpush.bf16.msra.mxu0 %v1614
    %1824 = vmatpush.bf16.msra.mxu0 %v1606
    %1825 = vmatpush.bf16.msra.mxu0 %v1598
    %1826 = vmatpush.bf16.msra.mxu0 %v1590
    %1827 = vmatpush.bf16.msra.mxu0 %v1582
    %1828 = vmatpush.bf16.msra.mxu0 %v1574
    %1829 = vmatpush.bf16.msra.mxu0 %v1566
    %1830 = vmatmul.bf16.gmra.mxu0 %v1178
    %v1831 = vpop.f32.mrf.mxu0
    %v1832 = vadd.f32 %v990, %v1831
    %v1833 = vpop.f32.mrf.mxu0
    %1834 = vdwg.mxu0
    %1835 = vmatpush.bf16.msra.mxu0 %v1686
    %1836 = vmatpush.bf16.msra.mxu0 %v1678
    %1837 = vmatpush.bf16.msra.mxu0 %v1670
    %1838 = vmatpush.bf16.msra.mxu0 %v1662
    %1839 = vmatpush.bf16.msra.mxu0 %v1654
    %1840 = vmatpush.bf16.msra.mxu0 %v1646
    %1841 = vmatpush.bf16.msra.mxu0 %v1638
    %1842 = vmatpush.bf16.msra.mxu0 %v1630
    %1843 = vmatmul.bf16.gmra.mxu0 %v1179
    %v1844 = vpop.f32.mrf.mxu0
    %v1845 = vadd.f32 %v1832, %v1844
    %v1846 = vpop.f32.mrf.mxu0
    %1847 = vdwg.mxu0
    %1848 = vmatpush.bf16.msra.mxu0 %v1623
    %1849 = vmatpush.bf16.msra.mxu0 %v1615
    %1850 = vmatpush.bf16.msra.mxu0 %v1607
    %1851 = vmatpush.bf16.msra.mxu0 %v1599
    %1852 = vmatpush.bf16.msra.mxu0 %v1591
    %1853 = vmatpush.bf16.msra.mxu0 %v1583
    %1854 = vmatpush.bf16.msra.mxu0 %v1575
    %1855 = vmatpush.bf16.msra.mxu0 %v1567
    %1856 = vmatmul.bf16.gmra.mxu0 %v1178
    %v1857 = vpop.f32.mrf.mxu0
    %v1858 = vadd.f32 %v1016, %v1857
    %v1859 = vpop.f32.mrf.mxu0
    %1860 = vdwg.mxu0
    %1861 = vmatpush.bf16.msra.mxu0 %v1687
    %1862 = vmatpush.bf16.msra.mxu0 %v1679
    %1863 = vmatpush.bf16.msra.mxu0 %v1671
    %1864 = vmatpush.bf16.msra.mxu0 %v1663
    %1865 = vmatpush.bf16.msra.mxu0 %v1655
    %1866 = vmatpush.bf16.msra.mxu0 %v1647
    %1867 = vmatpush.bf16.msra.mxu0 %v1639
    %1868 = vmatpush.bf16.msra.mxu0 %v1631
    %1869 = vmatmul.bf16.gmra.mxu0 %v1179
    %v1870 = vpop.f32.mrf.mxu0
    %v1871 = vadd.f32 %v1858, %v1870
    %v1872 = vpop.f32.mrf.mxu0
    %1873 = vdwg.mxu0
    %1874 = vmatpush.bf16.msra.mxu0 %v1624
    %1875 = vmatpush.bf16.msra.mxu0 %v1616
    %1876 = vmatpush.bf16.msra.mxu0 %v1608
    %1877 = vmatpush.bf16.msra.mxu0 %v1600
    %1878 = vmatpush.bf16.msra.mxu0 %v1592
    %1879 = vmatpush.bf16.msra.mxu0 %v1584
    %1880 = vmatpush.bf16.msra.mxu0 %v1576
    %1881 = vmatpush.bf16.msra.mxu0 %v1568
    %1882 = vmatmul.bf16.gmra.mxu0 %v1178
    %v1883 = vpop.f32.mrf.mxu0
    %v1884 = vadd.f32 %v1042, %v1883
    %v1885 = vpop.f32.mrf.mxu0
    %1886 = vdwg.mxu0
    %1887 = vmatpush.bf16.msra.mxu0 %v1688
    %1888 = vmatpush.bf16.msra.mxu0 %v1680
    %1889 = vmatpush.bf16.msra.mxu0 %v1672
    %1890 = vmatpush.bf16.msra.mxu0 %v1664
    %1891 = vmatpush.bf16.msra.mxu0 %v1656
    %1892 = vmatpush.bf16.msra.mxu0 %v1648
    %1893 = vmatpush.bf16.msra.mxu0 %v1640
    %1894 = vmatpush.bf16.msra.mxu0 %v1632
    %1895 = vmatmul.bf16.gmra.mxu0 %v1179
    %v1896 = vpop.f32.mrf.mxu0
    %v1897 = vadd.f32 %v1884, %v1896
    %v1898 = vpop.f32.mrf.mxu0
    %1899 = vdwg.mxu0
    %1900 = vmatpush.bf16.msra.mxu0 %v1625
    %1901 = vmatpush.bf16.msra.mxu0 %v1617
    %1902 = vmatpush.bf16.msra.mxu0 %v1609
    %1903 = vmatpush.bf16.msra.mxu0 %v1601
    %1904 = vmatpush.bf16.msra.mxu0 %v1593
    %1905 = vmatpush.bf16.msra.mxu0 %v1585
    %1906 = vmatpush.bf16.msra.mxu0 %v1577
    %1907 = vmatpush.bf16.msra.mxu0 %v1569
    %1908 = vmatmul.bf16.gmra.mxu0 %v1178
    %v1909 = vpop.f32.mrf.mxu0
    %v1910 = vadd.f32 %v1068, %v1909
    %v1911 = vpop.f32.mrf.mxu0
    %1912 = vdwg.mxu0
    %1913 = vmatpush.bf16.msra.mxu0 %v1689
    %1914 = vmatpush.bf16.msra.mxu0 %v1681
    %1915 = vmatpush.bf16.msra.mxu0 %v1673
    %1916 = vmatpush.bf16.msra.mxu0 %v1665
    %1917 = vmatpush.bf16.msra.mxu0 %v1657
    %1918 = vmatpush.bf16.msra.mxu0 %v1649
    %1919 = vmatpush.bf16.msra.mxu0 %v1641
    %1920 = vmatpush.bf16.msra.mxu0 %v1633
    %1921 = vmatmul.bf16.gmra.mxu0 %v1179
    %v1922 = vpop.f32.mrf.mxu0
    %v1923 = vadd.f32 %v1910, %v1922
    %v1924 = vpop.f32.mrf.mxu0
    %1925 = vdwg.mxu0
    %1926 = vmatpush.bf16.msra.mxu0 %v1626
    %1927 = vmatpush.bf16.msra.mxu0 %v1618
    %1928 = vmatpush.bf16.msra.mxu0 %v1610
    %1929 = vmatpush.bf16.msra.mxu0 %v1602
    %1930 = vmatpush.bf16.msra.mxu0 %v1594
    %1931 = vmatpush.bf16.msra.mxu0 %v1586
    %1932 = vmatpush.bf16.msra.mxu0 %v1578
    %1933 = vmatpush.bf16.msra.mxu0 %v1570
    %1934 = vmatmul.bf16.gmra.mxu0 %v1178
    %v1935 = vpop.f32.mrf.mxu0
    %v1936 = vadd.f32 %v1094, %v1935
    %v1937 = vpop.f32.mrf.mxu0
    %1938 = vdwg.mxu0
    %1939 = vmatpush.bf16.msra.mxu0 %v1690
    %1940 = vmatpush.bf16.msra.mxu0 %v1682
    %1941 = vmatpush.bf16.msra.mxu0 %v1674
    %1942 = vmatpush.bf16.msra.mxu0 %v1666
    %1943 = vmatpush.bf16.msra.mxu0 %v1658
    %1944 = vmatpush.bf16.msra.mxu0 %v1650
    %1945 = vmatpush.bf16.msra.mxu0 %v1642
    %1946 = vmatpush.bf16.msra.mxu0 %v1634
    %1947 = vmatmul.bf16.gmra.mxu0 %v1179
    %v1948 = vpop.f32.mrf.mxu0
    %v1949 = vadd.f32 %v1936, %v1948
    %v1950 = vpop.f32.mrf.mxu0
    %1951 = vdwg.mxu0
    %1952 = vmatpush.bf16.msra.mxu0 %v1627
    %1953 = vmatpush.bf16.msra.mxu0 %v1619
    %1954 = vmatpush.bf16.msra.mxu0 %v1611
    %1955 = vmatpush.bf16.msra.mxu0 %v1603
    %1956 = vmatpush.bf16.msra.mxu0 %v1595
    %1957 = vmatpush.bf16.msra.mxu0 %v1587
    %1958 = vmatpush.bf16.msra.mxu0 %v1579
    %1959 = vmatpush.bf16.msra.mxu0 %v1571
    %1960 = vmatmul.bf16.gmra.mxu0 %v1178
    %v1961 = vpop.f32.mrf.mxu0
    %v1962 = vadd.f32 %v1120, %v1961
    %v1963 = vpop.f32.mrf.mxu0
    %1964 = vdwg.mxu0
    %1965 = vmatpush.bf16.msra.mxu0 %v1691
    %1966 = vmatpush.bf16.msra.mxu0 %v1683
    %1967 = vmatpush.bf16.msra.mxu0 %v1675
    %1968 = vmatpush.bf16.msra.mxu0 %v1667
    %1969 = vmatpush.bf16.msra.mxu0 %v1659
    %1970 = vmatpush.bf16.msra.mxu0 %v1651
    %1971 = vmatpush.bf16.msra.mxu0 %v1643
    %1972 = vmatpush.bf16.msra.mxu0 %v1635
    %1973 = vmatmul.bf16.gmra.mxu0 %v1179
    %v1974 = vpop.f32.mrf.mxu0
    %v1975 = vadd.f32 %v1962, %v1974
    %v1976 = vpop.f32.mrf.mxu0
    %1977 = vdwg.mxu0
    %1978 = vmatpush.bf16.msra.mxu0 %v1628
    %1979 = vmatpush.bf16.msra.mxu0 %v1620
    %1980 = vmatpush.bf16.msra.mxu0 %v1612
    %1981 = vmatpush.bf16.msra.mxu0 %v1604
    %1982 = vmatpush.bf16.msra.mxu0 %v1596
    %1983 = vmatpush.bf16.msra.mxu0 %v1588
    %1984 = vmatpush.bf16.msra.mxu0 %v1580
    %1985 = vmatpush.bf16.msra.mxu0 %v1572
    %1986 = vmatmul.bf16.gmra.mxu0 %v1178
    %v1987 = vpop.f32.mrf.mxu0
    %v1988 = vadd.f32 %v1146, %v1987
    %v1989 = vpop.f32.mrf.mxu0
    %1990 = vdwg.mxu0
    %1991 = vmatpush.bf16.msra.mxu0 %v1692
    %1992 = vmatpush.bf16.msra.mxu0 %v1684
    %1993 = vmatpush.bf16.msra.mxu0 %v1676
    %1994 = vmatpush.bf16.msra.mxu0 %v1668
    %1995 = vmatpush.bf16.msra.mxu0 %v1660
    %1996 = vmatpush.bf16.msra.mxu0 %v1652
    %1997 = vmatpush.bf16.msra.mxu0 %v1644
    %1998 = vmatpush.bf16.msra.mxu0 %v1636
    %1999 = vmatmul.bf16.gmra.mxu0 %v1179
    %v2000 = vpop.f32.mrf.mxu0
    %v2001 = vadd.f32 %v1988, %v2000
    %v2002 = vpop.f32.mrf.mxu0
    %2003 = vdwg.mxu0
    %2004 = vmatpush.bf16.msra.mxu0 %v1629
    %2005 = vmatpush.bf16.msra.mxu0 %v1621
    %2006 = vmatpush.bf16.msra.mxu0 %v1613
    %2007 = vmatpush.bf16.msra.mxu0 %v1605
    %2008 = vmatpush.bf16.msra.mxu0 %v1597
    %2009 = vmatpush.bf16.msra.mxu0 %v1589
    %2010 = vmatpush.bf16.msra.mxu0 %v1581
    %2011 = vmatpush.bf16.msra.mxu0 %v1573
    %2012 = vmatmul.bf16.gmra.mxu0 %v1178
    %v2013 = vpop.f32.mrf.mxu0
    %v2014 = vadd.f32 %v1172, %v2013
    %v2015 = vpop.f32.mrf.mxu0
    %2016 = vdwg.mxu0
    %2017 = vmatpush.bf16.msra.mxu0 %v1693
    %2018 = vmatpush.bf16.msra.mxu0 %v1685
    %2019 = vmatpush.bf16.msra.mxu0 %v1677
    %2020 = vmatpush.bf16.msra.mxu0 %v1669
    %2021 = vmatpush.bf16.msra.mxu0 %v1661
    %2022 = vmatpush.bf16.msra.mxu0 %v1653
    %2023 = vmatpush.bf16.msra.mxu0 %v1645
    %2024 = vmatpush.bf16.msra.mxu0 %v1637
    %2025 = vmatmul.bf16.gmra.mxu0 %v1179
    %v2026 = vpop.f32.mrf.mxu0
    %v2027 = vadd.f32 %v2014, %v2026
    %v2028 = vpop.f32.mrf.mxu0
    %2029 = vdwg.mxu0
    %v2030 = vld [vmem:[%s4] sm:$0xff]
    %v2032 = vperm.slane %v2030, 0
    %v2033 = vperm.slane %v2030, 1
    %v2034 = vperm.slane %v2030, 2
    %v2035 = vperm.slane %v2030, 3
    %v2036 = vperm.slane %v2030, 4
    %v2037 = vperm.slane %v2030, 5
    %v2038 = vperm.slane %v2030, 6
    %v2039 = vperm.slane %v2030, 7
    %v2048 = vadd.f32 %v1845, %v2032
    %v2049 = vadd.f32 %v1871, %v2033
    %v2050 = vadd.f32 %v1897, %v2034
    %v2051 = vadd.f32 %v1923, %v2035
    %v2052 = vadd.f32 %v1949, %v2036
    %v2053 = vadd.f32 %v1975, %v2037
    %v2054 = vadd.f32 %v2001, %v2038
    %v2055 = vadd.f32 %v2027, %v2039
    %v2056 = vxor.u32 %v2048, 2147483648
    %v2057 = vxor.u32 %v2049, 2147483648
    %v2058 = vmul.f32 %v2056, 1.442695
    %v2059 = vpow.pop %v2058
    %v2060 = vmul.f32 %v2057, 1.442695
    %v2061 = vpow.pop %v2060
    %v2062 = vadd.f32 %v2059, 1.0
    %v2063 = vadd.f32 %v2061, 1.0
    %v2064 = vrcp.pop %v2062
    %v2065 = vmul.f32 %v2062, %v2064
    %v2066 = vsub.f32 1.0, %v2065
    %v2067 = vmul.f32 %v2064, %v2066
    %v2068 = vadd.f32 %v2064, %v2067
    %vm2069 = vweird.f32 %v2062
    %vm2070 = vweird.f32 %v2064
    %vm2071 = vmor %vm2069, %vm2070
    %v2072 = vsel %vm2071, %v2064, %v2068
    %v2073 = vand.u32 2147483647, %v2062
    %vm2074 = vcmp.eq.f32.partialorder %v2073, 8.507059e+37
    %v2075 = vand.u32 %v2062, 2147483648
    %v2076 = vor.u32 1.1754944e-38, %v2075
    %v2077 = vsel %vm2074, %v2076, %v2072
    %v2078 = vmul.f32 1.0, %v2077
    %v2079 = vrcp.pop %v2063
    %v2080 = vmul.f32 %v2063, %v2079
    %v2081 = vsub.f32 1.0, %v2080
    %v2082 = vmul.f32 %v2079, %v2081
    %v2083 = vadd.f32 %v2079, %v2082
    %vm2084 = vweird.f32 %v2063
    %vm2085 = vweird.f32 %v2079
    %vm2086 = vmor %vm2084, %vm2085
    %v2087 = vsel %vm2086, %v2079, %v2083
    %v2088 = vand.u32 2147483647, %v2063
    %vm2089 = vcmp.eq.f32.partialorder %v2088, 8.507059e+37
    %v2090 = vand.u32 %v2063, 2147483648
    %v2091 = vor.u32 1.1754944e-38, %v2090
    %v2092 = vsel %vm2089, %v2091, %v2087
    %v2093 = vmul.f32 1.0, %v2092
    %v2094 = vxor.u32 %v2050, 2147483648
    %v2095 = vxor.u32 %v2051, 2147483648
    %v2096 = vmul.f32 %v2094, 1.442695
    %v2097 = vpow.pop %v2096
    %v2098 = vmul.f32 %v2095, 1.442695
    %v2099 = vpow.pop %v2098
    %v2100 = vadd.f32 %v2097, 1.0
    %v2101 = vadd.f32 %v2099, 1.0
    %v2102 = vrcp.pop %v2100
    %v2103 = vmul.f32 %v2100, %v2102
    %v2104 = vsub.f32 1.0, %v2103
    %v2105 = vmul.f32 %v2102, %v2104
    %v2106 = vadd.f32 %v2102, %v2105
    %vm2107 = vweird.f32 %v2100
    %vm2108 = vweird.f32 %v2102
    %vm2109 = vmor %vm2107, %vm2108
    %v2110 = vsel %vm2109, %v2102, %v2106
    %v2111 = vand.u32 2147483647, %v2100
    %vm2112 = vcmp.eq.f32.partialorder %v2111, 8.507059e+37
    %v2113 = vand.u32 %v2100, 2147483648
    %v2114 = vor.u32 1.1754944e-38, %v2113
    %v2115 = vsel %vm2112, %v2114, %v2110
    %v2116 = vmul.f32 1.0, %v2115
    %v2117 = vrcp.pop %v2101
    %v2118 = vmul.f32 %v2101, %v2117
    %v2119 = vsub.f32 1.0, %v2118
    %v2120 = vmul.f32 %v2117, %v2119
    %v2121 = vadd.f32 %v2117, %v2120
    %vm2122 = vweird.f32 %v2101
    %vm2123 = vweird.f32 %v2117
    %vm2124 = vmor %vm2122, %vm2123
    %v2125 = vsel %vm2124, %v2117, %v2121
    %v2126 = vand.u32 2147483647, %v2101
    %vm2127 = vcmp.eq.f32.partialorder %v2126, 8.507059e+37
    %v2128 = vand.u32 %v2101, 2147483648
    %v2129 = vor.u32 1.1754944e-38, %v2128
    %v2130 = vsel %vm2127, %v2129, %v2125
    %v2131 = vmul.f32 1.0, %v2130
    %v2132 = vtanh.pop %v2052
    %v2133 = vtanh.pop %v2053
    %v2134 = vxor.u32 %v2054, 2147483648
    %v2135 = vxor.u32 %v2055, 2147483648
    %v2136 = vmul.f32 %v2134, 1.442695
    %v2137 = vpow.pop %v2136
    %v2138 = vmul.f32 %v2135, 1.442695
    %v2139 = vpow.pop %v2138
    %v2140 = vadd.f32 %v2137, 1.0
    %v2141 = vadd.f32 %v2139, 1.0
    %v2142 = vrcp.pop %v2140
    %v2143 = vmul.f32 %v2140, %v2142
    %v2144 = vsub.f32 1.0, %v2143
    %v2145 = vmul.f32 %v2142, %v2144
    %v2146 = vadd.f32 %v2142, %v2145
    %vm2147 = vweird.f32 %v2140
    %vm2148 = vweird.f32 %v2142
    %vm2149 = vmor %vm2147, %vm2148
    %v2150 = vsel %vm2149, %v2142, %v2146
    %v2151 = vand.u32 2147483647, %v2140
    %vm2152 = vcmp.eq.f32.partialorder %v2151, 8.507059e+37
    %v2153 = vand.u32 %v2140, 2147483648
    %v2154 = vor.u32 1.1754944e-38, %v2153
    %v2155 = vsel %vm2152, %v2154, %v2150
    %v2156 = vmul.f32 1.0, %v2155
    %v2157 = vrcp.pop %v2141
    %v2158 = vmul.f32 %v2141, %v2157
    %v2159 = vsub.f32 1.0, %v2158
    %v2160 = vmul.f32 %v2157, %v2159
    %v2161 = vadd.f32 %v2157, %v2160
    %vm2162 = vweird.f32 %v2141
    %vm2163 = vweird.f32 %v2157
    %vm2164 = vmor %vm2162, %vm2163
    %v2165 = vsel %vm2164, %v2157, %v2161
    %v2166 = vand.u32 2147483647, %v2141
    %vm2167 = vcmp.eq.f32.partialorder %v2166, 8.507059e+37
    %v2168 = vand.u32 %v2141, 2147483648
    %v2169 = vor.u32 1.1754944e-38, %v2168
    %v2170 = vsel %vm2167, %v2169, %v2165
    %v2171 = vmul.f32 1.0, %v2170
    %v2172 = vld [vmem:[#allocation3] sm:$0xff]
    %v2173 = vld [vmem:[#allocation3 + $0x8] sm:$0xff]
    %v2174 = vmul.f32 %v2116, %v2172
    %v2175 = vmul.f32 %v2131, %v2173
    %v2176 = vmul.f32 %v2078, %v2132
    %v2177 = vmul.f32 %v2093, %v2133
    %v2178 = vadd.f32 %v2174, %v2176
    %v2179 = vadd.f32 %v2175, %v2177
    %v2180 = vtanh.pop %v2178
    %v2181 = vtanh.pop %v2179
    %v2182 = vmul.f32 %v2156, %v2180
    %v2183 = vmul.f32 %v2171, %v2181
    %2184 = vst [vmem:[#allocation2] sm:$0xff] %v2182
    %2185 = vst [vmem:[#allocation2 + $0x8] sm:$0xff] %v2183
    %2186 = vst [vmem:[#allocation3] sm:$0xff] %v2178
    %2187 = vst [vmem:[#allocation3 + $0x8] sm:$0xff] %v2179
    %2188 = vst [vmem:[#allocation9] sm:$0xff] %v2182
    %2189 = vst [vmem:[#allocation9 + $0x8] sm:$0xff] %v2183
    %2190 = vst [vmem:[#allocation10] sm:$0xff] %v2178
    %2191 = vst [vmem:[#allocation10 + $0x8] sm:$0xff] %v2179
    // Predicated region
    $region34: #{lstm_sequence.1} parent=1 // pred_check
      _
    $region35: #{lstm_sequence.1} parent=1 // pred_check_branch
      %2193 = sbr.rel (0) target = $region37
    $region36: #{lstm_sequence.1} parent=1 // pred_region
      %2195 = vsyncadd [#allocation6], 0
      %s2197 = sshll.u32 [#allocation9], 4
      %s2198 = int_to_ptr.vmem [resolvable:$true] %s2197
      %s2199 = sshll.u32 %s5, 4
      %s2200 = int_to_ptr.hbm [resolvable:$true] %s2199
      %2202 = dma.vmem_to_hbm [thread:$0]  %s2198, 256, %s2200, [#allocation6]
    $region37: #{lstm_sequence.1} parent=1 // pred_fallthru
      _
    // Predicated region
    $region38: #{lstm_sequence.1} parent=1 // pred_check
      _
    $region39: #{lstm_sequence.1} parent=1 // pred_check_branch
      %2204 = sbr.rel (0) target = $region41
    $region40: #{lstm_sequence.1} parent=1 // pred_region
      %2206 = vsyncadd [#allocation11], 0
      %s2208 = sshll.u32 [#allocation10], 4
      %s2209 = int_to_ptr.vmem [resolvable:$true] %s2208
      %s2210 = sshll.u32 %s6, 4
      %s2211 = int_to_ptr.hbm [resolvable:$true] %s2210
      %2213 = dma.vmem_to_hbm [thread:$0]  %s2209, 256, %s2211, [#allocation11]
    $region41: #{lstm_sequence.1} parent=1 // pred_fallthru
      _
    // Predicated region
    $region42: #{lstm_sequence.1} parent=1 // pred_check
      _
    $region43: #{lstm_sequence.1} parent=1 // pred_check_branch
      %2215 = sbr.rel (0) target = $region45
    $region44: #{lstm_sequence.1} parent=1 // pred_region
      %2217 = dma.done [#allocation6], 256
    $region45: #{lstm_sequence.1} parent=1 // pred_fallthru
      _
    // Predicated region
    $region46: #{lstm_sequence.1} parent=1 // pred_check
      _
    $region47: #{lstm_sequence.1} parent=1 // pred_check_branch
      %2219 = sbr.rel (0) target = $region49
    $region48: #{lstm_sequence.1} parent=1 // pred_region
      %2221 = dma.done [#allocation11], 256
    $region49: #{lstm_sequence.1} parent=1 // pred_fallthru
      _
    %2222 = vsyncpa [#allocation5], 1
    %2223 = vsyncpa [#allocation8], 1
    %2224 = vsyncpa [#allocation6], 1
    %2225 = vsyncpa [#allocation11], 1

</llo_original>
